<compile_context>
chip_gen: v7x
topology: tpu7x:2x2x1
jax: 0.10.0
libtpu: 0.0.40
codegen_flags: <defaults>
</compile_context>

<pallas_src>
import functools

import jax
import jax.numpy as jnp
from jax.experimental import pallas as pl
from jax.experimental.pallas import tpu as pltpu


# ---------------------------------------------------------------------------
# BlockSpec helpers
# ---------------------------------------------------------------------------
def _whole(shape):
    """Whole array as one block, resident across all grid steps (constant index_map)."""
    n = len(shape)
    return pl.BlockSpec(shape, lambda g, _n=n: (0,) * _n)


def _per_graph(shape):
    """Leading axis is the graph axis; one graph slab per grid step."""
    n = len(shape)
    return pl.BlockSpec((1,) + tuple(shape[1:]), lambda g, _n=n: (g,) + (0,) * (_n - 1))


# ---------------------------------------------------------------------------
# Fused forward kernel (one grid step == one graph)
# ---------------------------------------------------------------------------
def _disc(x, w1, b1, w2, b2):
    """Linear -> LeakyReLU(0.2) -> Linear -> log_softmax(dim=1)."""
    h = jnp.dot(x, w1, preferred_element_type=jnp.float32) + b1
    h = jnp.where(h > 0.0, h, 0.2 * h)
    z = jnp.dot(h, w2, preferred_element_type=jnp.float32) + b2
    m = jnp.max(z, axis=-1, keepdims=True)
    lse = jnp.log(jnp.sum(jnp.exp(z - m), axis=-1, keepdims=True)) + m
    return z - lse


def _fused_forward_kernel(x_ref, wr_ref, br_ref, adj_ref, *refs, num_gnn_layers):
    gnn = refs[: 2 * num_gnn_layers]
    (dd_w1, dd_b1, dd_w2, dd_b2,
     ddl_w1, ddl_b1, ddl_w2, ddl_b2,
     hlin_o, hrelu_o, dd_o, ddl_o) = refs[2 * num_gnn_layers:]

    x = x_ref[0]          # (N, Dmax), zero-padded columns
    adj = adj_ref[0]      # (N, N)

    # dimRedu: Dropout(0.7) [identity in eval] -> Linear(Dmax -> h_dim)
    h_lin = jnp.dot(x, wr_ref[0], preferred_element_type=jnp.float32) + br_ref[0]

    # Shared GNN stack: H <- relu(adj @ (H @ W) + b); last layer's ReLU fuses the outer F.relu.
    h = h_lin
    for l in range(num_gnn_layers):
        w = gnn[2 * l][...]
        b = gnn[2 * l + 1][...]
        xw = jnp.dot(h, w, preferred_element_type=jnp.float32)
        h = jnp.dot(adj, xw, preferred_element_type=jnp.float32) + b
        h = jnp.maximum(h, 0.0)

    hlin_o[0] = h_lin
    hrelu_o[0] = h
    # Both discriminators reuse the already-resident activations (no HBM round-trip).
    dd_o[0] = _disc(h, dd_w1[...], dd_b1[...], dd_w2[...], dd_b2[...])
    ddl_o[0] = _disc(h_lin, ddl_w1[...], ddl_b1[...], ddl_w2[...], ddl_b2[...])


def fused_forward(x_stack, wr_stack, br_stack, adj_stack, gnn_layers, dd, ddl):
    G, N, _ = x_stack.shape
    h_dim = wr_stack.shape[-1]
    ndim = gnn_layers[-1][0].shape[-1]
    num_layers = len(gnn_layers)

    gnn_flat = []
    for w, b in gnn_layers:
        gnn_flat += [w, b]
    disc_flat = [dd["w1"], dd["b1"], dd["w2"], dd["b2"],
                 ddl["w1"], ddl["b1"], ddl["w2"], ddl["b2"]]

    in_arrays = [x_stack, wr_stack, br_stack, adj_stack] + gnn_flat + disc_flat
    in_specs = [
        _per_graph(x_stack.shape),
        _per_graph(wr_stack.shape),
        _per_graph(br_stack.shape),
        _per_graph(adj_stack.shape),
    ] + [_whole(a.shape) for a in gnn_flat + disc_flat]

    out_shape = (
        jax.ShapeDtypeStruct((G, N, h_dim), jnp.float32),   # h_linear
        jax.ShapeDtypeStruct((G, N, ndim), jnp.float32),    # h_relu
        jax.ShapeDtypeStruct((G, N, 2), jnp.float32),       # log_softmax(disc(h_relu))
        jax.ShapeDtypeStruct((G, N, 2), jnp.float32),       # log_softmax(disc_linear(h_linear))
    )
    out_specs = tuple(_per_graph(s.shape) for s in out_shape)

    kernel = functools.partial(_fused_forward_kernel, num_gnn_layers=num_layers)
    return pl.pallas_call(
        kernel,
        out_shape=out_shape,
        grid=(G,),
        in_specs=in_specs,
        out_specs=out_specs,
        compiler_params=pltpu.CompilerParams(
            dimension_semantics=("parallel",)),   # graph axis -> both TCs on v7x
    )(*in_arrays)


# ---------------------------------------------------------------------------
# Model assembly (glue in plain JAX; all compute lives in the fused kernel)
# ---------------------------------------------------------------------------
def transnet_forward(params, sinputs, tinputs, sadj, tadj, rate):
    # `rate` is only consumed by GradientReversalLayer.backward -> no forward effect.
    del rate
    num_sources = len(sinputs)
    inputs = list(sinputs) + [tinputs]
    adjs = list(sadj) + [tadj]

    d_max = params["dimredu_w"].shape[1]
    x_stack = jnp.stack(
        [jnp.pad(x, ((0, 0), (0, d_max - x.shape[1]))) for x in inputs]
    )  # (G, N, d_max)
    adj_stack = jnp.stack(adjs)  # (G, N, N)

    h_lin, h_relu, dd_out, ddl_out = fused_forward(
        x_stack,
        params["dimredu_w"],
        params["dimredu_b"],
        adj_stack,
        params["hiddens"]["layers"],
        params["domain_disc"],
        params["domain_disc_linear"],
    )

    sh_linear = [h_lin[i] for i in range(num_sources)]
    th_linear = h_lin[num_sources]
    sh_relu = [h_relu[i] for i in range(num_sources)]
    th_relu = h_relu[num_sources]

    sdomains = [dd_out[i] for i in range(num_sources)]
    sdomains_linear = [ddl_out[i] for i in range(num_sources)]
    # Target-branch discriminators use shared weights -> identical across sources:
    # compute once, replicate references (no redundant kernels).
    tdomains = [dd_out[num_sources]] * num_sources
    tdomains_linear = [ddl_out[num_sources]] * num_sources

    return (
        sh_relu,
        th_relu,
        sh_linear,
        th_linear,
        sdomains,
        tdomains,
        sdomains_linear,
        tdomains_linear,
    )


# ---------------------------------------------------------------------------
# Deterministic parameter construction
# ---------------------------------------------------------------------------
def _init_linear(key, d_in, d_out, scale=0.1):
    kw, kb = jax.random.split(key)
    w = scale * jax.random.normal(kw, (d_in, d_out), dtype=jnp.float32)
    b = scale * jax.random.normal(kb, (1, d_out), dtype=jnp.float32)
    return w, b


def init_params(key, configs):
    h_dim = configs["feat_num"]
    ndim = configs["ndim"]
    input_dims = configs["input_dim"]
    d_max = max(input_dims)
    keys = jax.random.split(key, 16)
    k_iter = iter(keys)

    # dimRedu: one (Dropout, Linear(input_dim[i] -> h_dim)) per input stream.
    # Weights padded with zero rows up to d_max and stacked -> [G, d_max, h_dim]
    # (zero pad rows contribute exactly 0, so the padded matmul is exact).
    wr, br = [], []
    for d_in in input_dims:
        w, b = _init_linear(next(k_iter), d_in, h_dim)
        wr.append(jnp.pad(w, ((0, d_max - d_in), (0, 0))))
        br.append(b)
    dimredu_w = jnp.stack(wr)   # (G, d_max, h_dim)
    dimredu_b = jnp.stack(br)   # (G, 1, h_dim)

    # shared GNN: dims [h_dim] + hidden_layers + [ndim]
    dims = [h_dim] + list(configs["hidden_layers"]) + [ndim]
    layers = [_init_linear(next(k_iter), a, b) for a, b in zip(dims[:-1], dims[1:])]
    hiddens = {"layers": layers}

    # domain_disc: Linear(ndim, ndim) -> LeakyReLU(0.2) -> Linear(ndim, 2) (shared across sources)
    w1, b1 = _init_linear(next(k_iter), ndim, ndim)
    w2, b2 = _init_linear(next(k_iter), ndim, 2)
    dd = {"w1": w1, "b1": b1, "w2": w2, "b2": b2}

    # domain_disc_linear: Linear(h_dim, h_dim) -> LeakyReLU(0.2) -> Linear(h_dim, 2)
    w1l, b1l = _init_linear(next(k_iter), h_dim, h_dim)
    w2l, b2l = _init_linear(next(k_iter), h_dim, 2)
    ddl = {"w1": w1l, "b1": b1l, "w2": w2l, "b2": b2l}

    return {
        "dimredu_w": dimredu_w,
        "dimredu_b": dimredu_b,
        "hiddens": hiddens,
        "domain_disc": dd,
        "domain_disc_linear": ddl,
    }


# ---------------------------------------------------------------------------
# Driver
# ---------------------------------------------------------------------------
if __name__ == "__main__":
    configs = {
        "num_sources": 2,
        "input_dim": [20, 24, 28],  # one per source + target
        "feat_num": 16,             # h_dim
        "hidden_layers": [32],
        "ndim": 24,
        "num_classes": [3, 4],
        "type": "gcn",
        "dropout": 0.5,
    }
    n_nodes = 8  # nodes per graph (multiple of 8 -> sublane-aligned)

    key = jax.random.PRNGKey(0)
    k_params, k_data = jax.random.split(key)
    params = init_params(k_params, configs)

    dkeys = jax.random.split(k_data, 8)
    sinputs = [
        jax.random.normal(dkeys[i], (n_nodes, configs["input_dim"][i]), dtype=jnp.float32)
        for i in range(configs["num_sources"])
    ]
    tinputs = jax.random.normal(
        dkeys[2], (n_nodes, configs["input_dim"][-1]), dtype=jnp.float32
    )

    # simple symmetric row-normalized adjacencies with self loops
    def make_adj(k):
        a = (jax.random.uniform(k, (n_nodes, n_nodes)) > 0.5).astype(jnp.float32)
        a = jnp.maximum(a, a.T) + jnp.eye(n_nodes, dtype=jnp.float32)
        return a / jnp.sum(a, axis=1, keepdims=True)

    sadj = [make_adj(dkeys[3]), make_adj(dkeys[4])]
    tadj = make_adj(dkeys[5])
    rate = 0.3

    out = transnet_forward(params, sinputs, tinputs, sadj, tadj, rate)
    jax.block_until_ready(out)
    print("KERNEL_OK")
</pallas_src>

<mosaic_0001>
module attributes {stable_mosaic.version = 11 : i64} {
  func.func @_fused_forward_kernel(%arg0: i32, %arg1: memref<1x8x28xf32, #tpu.memory_space<vmem>>, %arg2: memref<1x28x16xf32, #tpu.memory_space<vmem>>, %arg3: memref<1x1x16xf32, #tpu.memory_space<vmem>>, %arg4: memref<1x8x8xf32, #tpu.memory_space<vmem>>, %arg5: memref<16x32xf32, #tpu.memory_space<vmem>>, %arg6: memref<1x32xf32, #tpu.memory_space<vmem>>, %arg7: memref<32x24xf32, #tpu.memory_space<vmem>>, %arg8: memref<1x24xf32, #tpu.memory_space<vmem>>, %arg9: memref<24x24xf32, #tpu.memory_space<vmem>>, %arg10: memref<1x24xf32, #tpu.memory_space<vmem>>, %arg11: memref<24x2xf32, #tpu.memory_space<vmem>>, %arg12: memref<1x2xf32, #tpu.memory_space<vmem>>, %arg13: memref<16x16xf32, #tpu.memory_space<vmem>>, %arg14: memref<1x16xf32, #tpu.memory_space<vmem>>, %arg15: memref<16x2xf32, #tpu.memory_space<vmem>>, %arg16: memref<1x2xf32, #tpu.memory_space<vmem>>, %arg17: memref<1x8x16xf32, #tpu.memory_space<vmem>>, %arg18: memref<1x8x24xf32, #tpu.memory_space<vmem>>, %arg19: memref<1x8x2xf32, #tpu.memory_space<vmem>>, %arg20: memref<1x8x2xf32, #tpu.memory_space<vmem>>) attributes {dimension_semantics = [#tpu.dimension_semantics<parallel>], iteration_bounds = array<i64: 3>, scalar_prefetch = 0 : i64, scratch_operands = 0 : i64, tpu.core_type = #tpu.core_type<tc>, window_params = [{transform_indices = @transform_0, window_bounds = array<i64: 1, 8, 28>}, {transform_indices = @transform_1, window_bounds = array<i64: 1, 28, 16>}, {transform_indices = @transform_2, window_bounds = array<i64: 1, 1, 16>}, {transform_indices = @transform_3, window_bounds = array<i64: 1, 8, 8>}, {pipeline_mode = #tpu.pipeline_mode<synchronous>, transform_indices = @transform_4, window_bounds = array<i64: 16, 32>}, {pipeline_mode = #tpu.pipeline_mode<synchronous>, transform_indices = @transform_5, window_bounds = array<i64: 1, 32>}, {pipeline_mode = #tpu.pipeline_mode<synchronous>, transform_indices = @transform_6, window_bounds = array<i64: 32, 24>}, {pipeline_mode = #tpu.pipeline_mode<synchronous>, transform_indices = @transform_7, window_bounds = array<i64: 1, 24>}, {pipeline_mode = #tpu.pipeline_mode<synchronous>, transform_indices = @transform_8, window_bounds = array<i64: 24, 24>}, {pipeline_mode = #tpu.pipeline_mode<synchronous>, transform_indices = @transform_9, window_bounds = array<i64: 1, 24>}, {pipeline_mode = #tpu.pipeline_mode<synchronous>, transform_indices = @transform_10, window_bounds = array<i64: 24, 2>}, {pipeline_mode = #tpu.pipeline_mode<synchronous>, transform_indices = @transform_11, window_bounds = array<i64: 1, 2>}, {pipeline_mode = #tpu.pipeline_mode<synchronous>, transform_indices = @transform_12, window_bounds = array<i64: 16, 16>}, {pipeline_mode = #tpu.pipeline_mode<synchronous>, transform_indices = @transform_13, window_bounds = array<i64: 1, 16>}, {pipeline_mode = #tpu.pipeline_mode<synchronous>, transform_indices = @transform_14, window_bounds = array<i64: 16, 2>}, {pipeline_mode = #tpu.pipeline_mode<synchronous>, transform_indices = @transform_15, window_bounds = array<i64: 1, 2>}, {transform_indices = @transform_16, window_bounds = array<i64: 1, 8, 16>}, {transform_indices = @transform_17, window_bounds = array<i64: 1, 8, 24>}, {transform_indices = @transform_18, window_bounds = array<i64: 1, 8, 2>}, {transform_indices = @transform_19, window_bounds = array<i64: 1, 8, 2>}]} {
    %c0 = arith.constant 0 : index
    %c0_0 = arith.constant 0 : index
    %c0_1 = arith.constant 0 : index
    %0 = vector.load %arg1[%c0, %c0_0, %c0_1] : memref<1x8x28xf32, #tpu.memory_space<vmem>>, vector<1x8x28xf32>
    %1 = vector.shape_cast %0 : vector<1x8x28xf32> to vector<8x28xf32>
    %c0_2 = arith.constant 0 : index
    %c0_3 = arith.constant 0 : index
    %c0_4 = arith.constant 0 : index
    %2 = vector.load %arg4[%c0_2, %c0_3, %c0_4] : memref<1x8x8xf32, #tpu.memory_space<vmem>>, vector<1x8x8xf32>
    %3 = vector.shape_cast %2 : vector<1x8x8xf32> to vector<8x8xf32>
    %c0_5 = arith.constant 0 : index
    %c0_6 = arith.constant 0 : index
    %c0_7 = arith.constant 0 : index
    %4 = vector.load %arg2[%c0_5, %c0_6, %c0_7] : memref<1x28x16xf32, #tpu.memory_space<vmem>>, vector<1x28x16xf32>
    %5 = vector.shape_cast %4 : vector<1x28x16xf32> to vector<28x16xf32>
    %cst = arith.constant dense<0.000000e+00> : vector<8x16xf32>
    %6 = tpu.matmul %1, %5, %cst {dimension_numbers = #tpu.dot_dimension_numbers<[1], [0], [0], [1], [0, 0, 1, 1], [], []>} : vector<8x28xf32>, vector<28x16xf32>, vector<8x16xf32> -> vector<8x16xf32>
    %c0_8 = arith.constant 0 : index
    %c0_9 = arith.constant 0 : index
    %c0_10 = arith.constant 0 : index
    %7 = vector.load %arg3[%c0_8, %c0_9, %c0_10] : memref<1x1x16xf32, #tpu.memory_space<vmem>>, vector<1x1x16xf32>
    %8 = vector.shape_cast %7 : vector<1x1x16xf32> to vector<1x16xf32>
    %9 = vector.broadcast %8 : vector<1x16xf32> to vector<8x16xf32>
    %10 = arith.addf %6, %9 : vector<8x16xf32>
    %c0_11 = arith.constant 0 : index
    %c0_12 = arith.constant 0 : index
    %11 = vector.load %arg5[%c0_11, %c0_12] : memref<16x32xf32, #tpu.memory_space<vmem>>, vector<16x32xf32>
    %c0_13 = arith.constant 0 : index
    %c0_14 = arith.constant 0 : index
    %12 = vector.load %arg6[%c0_13, %c0_14] : memref<1x32xf32, #tpu.memory_space<vmem>>, vector<1x32xf32>
    %cst_15 = arith.constant dense<0.000000e+00> : vector<8x32xf32>
    %13 = tpu.matmul %10, %11, %cst_15 {dimension_numbers = #tpu.dot_dimension_numbers<[1], [0], [0], [1], [0, 0, 1, 1], [], []>} : vector<8x16xf32>, vector<16x32xf32>, vector<8x32xf32> -> vector<8x32xf32>
    %cst_16 = arith.constant dense<0.000000e+00> : vector<8x32xf32>
    %14 = tpu.matmul %3, %13, %cst_16 {dimension_numbers = #tpu.dot_dimension_numbers<[1], [0], [0], [1], [0, 0, 1, 1], [], []>} : vector<8x8xf32>, vector<8x32xf32>, vector<8x32xf32> -> vector<8x32xf32>
    %15 = vector.broadcast %12 : vector<1x32xf32> to vector<8x32xf32>
    %16 = arith.addf %14, %15 : vector<8x32xf32>
    %cst_17 = arith.constant 0.000000e+00 : f32
    %17 = vector.broadcast %cst_17 : f32 to vector<8x32xf32>
    %18 = arith.maximumf %16, %17 : vector<8x32xf32>
    %c0_18 = arith.constant 0 : index
    %c0_19 = arith.constant 0 : index
    %19 = vector.load %arg7[%c0_18, %c0_19] : memref<32x24xf32, #tpu.memory_space<vmem>>, vector<32x24xf32>
    %c0_20 = arith.constant 0 : index
    %c0_21 = arith.constant 0 : index
    %20 = vector.load %arg8[%c0_20, %c0_21] : memref<1x24xf32, #tpu.memory_space<vmem>>, vector<1x24xf32>
    %cst_22 = arith.constant dense<0.000000e+00> : vector<8x24xf32>
    %21 = tpu.matmul %18, %19, %cst_22 {dimension_numbers = #tpu.dot_dimension_numbers<[1], [0], [0], [1], [0, 0, 1, 1], [], []>} : vector<8x32xf32>, vector<32x24xf32>, vector<8x24xf32> -> vector<8x24xf32>
    %cst_23 = arith.constant dense<0.000000e+00> : vector<8x24xf32>
    %22 = tpu.matmul %3, %21, %cst_23 {dimension_numbers = #tpu.dot_dimension_numbers<[1], [0], [0], [1], [0, 0, 1, 1], [], []>} : vector<8x8xf32>, vector<8x24xf32>, vector<8x24xf32> -> vector<8x24xf32>
    %23 = vector.broadcast %20 : vector<1x24xf32> to vector<8x24xf32>
    %24 = arith.addf %22, %23 : vector<8x24xf32>
    %cst_24 = arith.constant 0.000000e+00 : f32
    %25 = vector.broadcast %cst_24 : f32 to vector<8x24xf32>
    %26 = arith.maximumf %24, %25 : vector<8x24xf32>
    %c0_25 = arith.constant 0 : index
    %c0_26 = arith.constant 0 : index
    %c0_27 = arith.constant 0 : index
    %27 = vector.load %arg17[%c0_25, %c0_26, %c0_27] : memref<1x8x16xf32, #tpu.memory_space<vmem>>, vector<1x8x16xf32>
    %28 = vector.shape_cast %27 : vector<1x8x16xf32> to vector<8x16xf32>
    %29 = vector.shape_cast %10 : vector<8x16xf32> to vector<1x8x16xf32>
    tpu.vector_store %arg17[%c0_25, %c0_26, %c0_27], %29 {strides = array<i32>} : memref<1x8x16xf32, #tpu.memory_space<vmem>>, vector<1x8x16xf32>,
    %c0_28 = arith.constant 0 : index
    %c0_29 = arith.constant 0 : index
    %c0_30 = arith.constant 0 : index
    %30 = vector.load %arg18[%c0_28, %c0_29, %c0_30] : memref<1x8x24xf32, #tpu.memory_space<vmem>>, vector<1x8x24xf32>
    %31 = vector.shape_cast %30 : vector<1x8x24xf32> to vector<8x24xf32>
    %32 = vector.shape_cast %26 : vector<8x24xf32> to vector<1x8x24xf32>
    tpu.vector_store %arg18[%c0_28, %c0_29, %c0_30], %32 {strides = array<i32>} : memref<1x8x24xf32, #tpu.memory_space<vmem>>, vector<1x8x24xf32>,
    %c0_31 = arith.constant 0 : index
    %c0_32 = arith.constant 0 : index
    %33 = vector.load %arg9[%c0_31, %c0_32] : memref<24x24xf32, #tpu.memory_space<vmem>>, vector<24x24xf32>
    %c0_33 = arith.constant 0 : index
    %c0_34 = arith.constant 0 : index
    %34 = vector.load %arg10[%c0_33, %c0_34] : memref<1x24xf32, #tpu.memory_space<vmem>>, vector<1x24xf32>
    %c0_35 = arith.constant 0 : index
    %c0_36 = arith.constant 0 : index
    %35 = vector.load %arg11[%c0_35, %c0_36] : memref<24x2xf32, #tpu.memory_space<vmem>>, vector<24x2xf32>
    %c0_37 = arith.constant 0 : index
    %c0_38 = arith.constant 0 : index
    %36 = vector.load %arg12[%c0_37, %c0_38] : memref<1x2xf32, #tpu.memory_space<vmem>>, vector<1x2xf32>
    %cst_39 = arith.constant dense<0.000000e+00> : vector<8x24xf32>
    %37 = tpu.matmul %26, %33, %cst_39 {dimension_numbers = #tpu.dot_dimension_numbers<[1], [0], [0], [1], [0, 0, 1, 1], [], []>} : vector<8x24xf32>, vector<24x24xf32>, vector<8x24xf32> -> vector<8x24xf32>
    %38 = vector.broadcast %34 : vector<1x24xf32> to vector<8x24xf32>
    %39 = arith.addf %37, %38 : vector<8x24xf32>
    %cst_40 = arith.constant 0.000000e+00 : f32
    %40 = vector.broadcast %cst_40 : f32 to vector<8x24xf32>
    %41 = arith.cmpf ogt, %39, %40 : vector<8x24xf32>
    %cst_41 = arith.constant 2.000000e-01 : f32
    %42 = vector.broadcast %cst_41 : f32 to vector<8x24xf32>
    %43 = arith.mulf %42, %39 : vector<8x24xf32>
    %44 = arith.select %41, %39, %43 : vector<8x24xi1>, vector<8x24xf32>
    %cst_42 = arith.constant dense<0.000000e+00> : vector<8x2xf32>
    %45 = tpu.matmul %44, %35, %cst_42 {dimension_numbers = #tpu.dot_dimension_numbers<[1], [0], [0], [1], [0, 0, 1, 1], [], []>} : vector<8x24xf32>, vector<24x2xf32>, vector<8x2xf32> -> vector<8x2xf32>
    %46 = vector.broadcast %36 : vector<1x2xf32> to vector<8x2xf32>
    %47 = arith.addf %45, %46 : vector<8x2xf32>
    %cst_43 = arith.constant dense<0xFF800000> : vector<8xf32>
    %48 = vector.multi_reduction <maximumf>, %47, %cst_43 [1] : vector<8x2xf32> to vector<8xf32>
    %49 = vector.shape_cast %48 : vector<8xf32> to vector<8x1xf32>
    %50 = vector.broadcast %49 : vector<8x1xf32> to vector<8x2xf32>
    %51 = arith.subf %47, %50 : vector<8x2xf32>
    %52 = math.exp %51 : vector<8x2xf32>
    %cst_44 = arith.constant dense<0.000000e+00> : vector<8xf32>
    %53 = vector.multi_reduction <add>, %52, %cst_44 [1] : vector<8x2xf32> to vector<8xf32>
    %54 = vector.shape_cast %53 : vector<8xf32> to vector<8x1xf32>
    %55 = math.log %54 : vector<8x1xf32>
    %56 = arith.addf %55, %49 : vector<8x1xf32>
    %57 = vector.broadcast %56 : vector<8x1xf32> to vector<8x2xf32>
    %58 = arith.subf %47, %57 : vector<8x2xf32>
    %c0_45 = arith.constant 0 : index
    %c0_46 = arith.constant 0 : index
    %c0_47 = arith.constant 0 : index
    %59 = vector.load %arg19[%c0_45, %c0_46, %c0_47] : memref<1x8x2xf32, #tpu.memory_space<vmem>>, vector<1x8x2xf32>
    %60 = vector.shape_cast %59 : vector<1x8x2xf32> to vector<8x2xf32>
    %61 = vector.shape_cast %58 : vector<8x2xf32> to vector<1x8x2xf32>
    tpu.vector_store %arg19[%c0_45, %c0_46, %c0_47], %61 {strides = array<i32>} : memref<1x8x2xf32, #tpu.memory_space<vmem>>, vector<1x8x2xf32>,
    %c0_48 = arith.constant 0 : index
    %c0_49 = arith.constant 0 : index
    %62 = vector.load %arg13[%c0_48, %c0_49] : memref<16x16xf32, #tpu.memory_space<vmem>>, vector<16x16xf32>
    %c0_50 = arith.constant 0 : index
    %c0_51 = arith.constant 0 : index
    %63 = vector.load %arg14[%c0_50, %c0_51] : memref<1x16xf32, #tpu.memory_space<vmem>>, vector<1x16xf32>
    %c0_52 = arith.constant 0 : index
    %c0_53 = arith.constant 0 : index
    %64 = vector.load %arg15[%c0_52, %c0_53] : memref<16x2xf32, #tpu.memory_space<vmem>>, vector<16x2xf32>
    %c0_54 = arith.constant 0 : index
    %c0_55 = arith.constant 0 : index
    %65 = vector.load %arg16[%c0_54, %c0_55] : memref<1x2xf32, #tpu.memory_space<vmem>>, vector<1x2xf32>
    %cst_56 = arith.constant dense<0.000000e+00> : vector<8x16xf32>
    %66 = tpu.matmul %10, %62, %cst_56 {dimension_numbers = #tpu.dot_dimension_numbers<[1], [0], [0], [1], [0, 0, 1, 1], [], []>} : vector<8x16xf32>, vector<16x16xf32>, vector<8x16xf32> -> vector<8x16xf32>
    %67 = vector.broadcast %63 : vector<1x16xf32> to vector<8x16xf32>
    %68 = arith.addf %66, %67 : vector<8x16xf32>
    %cst_57 = arith.constant 0.000000e+00 : f32
    %69 = vector.broadcast %cst_57 : f32 to vector<8x16xf32>
    %70 = arith.cmpf ogt, %68, %69 : vector<8x16xf32>
    %cst_58 = arith.constant 2.000000e-01 : f32
    %71 = vector.broadcast %cst_58 : f32 to vector<8x16xf32>
    %72 = arith.mulf %71, %68 : vector<8x16xf32>
    %73 = arith.select %70, %68, %72 : vector<8x16xi1>, vector<8x16xf32>
    %cst_59 = arith.constant dense<0.000000e+00> : vector<8x2xf32>
    %74 = tpu.matmul %73, %64, %cst_59 {dimension_numbers = #tpu.dot_dimension_numbers<[1], [0], [0], [1], [0, 0, 1, 1], [], []>} : vector<8x16xf32>, vector<16x2xf32>, vector<8x2xf32> -> vector<8x2xf32>
    %75 = vector.broadcast %65 : vector<1x2xf32> to vector<8x2xf32>
    %76 = arith.addf %74, %75 : vector<8x2xf32>
    %cst_60 = arith.constant dense<0xFF800000> : vector<8xf32>
    %77 = vector.multi_reduction <maximumf>, %76, %cst_60 [1] : vector<8x2xf32> to vector<8xf32>
    %78 = vector.shape_cast %77 : vector<8xf32> to vector<8x1xf32>
    %79 = vector.broadcast %78 : vector<8x1xf32> to vector<8x2xf32>
    %80 = arith.subf %76, %79 : vector<8x2xf32>
    %81 = math.exp %80 : vector<8x2xf32>
    %cst_61 = arith.constant dense<0.000000e+00> : vector<8xf32>
    %82 = vector.multi_reduction <add>, %81, %cst_61 [1] : vector<8x2xf32> to vector<8xf32>
    %83 = vector.shape_cast %82 : vector<8xf32> to vector<8x1xf32>
    %84 = math.log %83 : vector<8x1xf32>
    %85 = arith.addf %84, %78 : vector<8x1xf32>
    %86 = vector.broadcast %85 : vector<8x1xf32> to vector<8x2xf32>
    %87 = arith.subf %76, %86 : vector<8x2xf32>
    %c0_62 = arith.constant 0 : index
    %c0_63 = arith.constant 0 : index
    %c0_64 = arith.constant 0 : index
    %88 = vector.load %arg20[%c0_62, %c0_63, %c0_64] : memref<1x8x2xf32, #tpu.memory_space<vmem>>, vector<1x8x2xf32>
    %89 = vector.shape_cast %88 : vector<1x8x2xf32> to vector<8x2xf32>
    %90 = vector.shape_cast %87 : vector<8x2xf32> to vector<1x8x2xf32>
    tpu.vector_store %arg20[%c0_62, %c0_63, %c0_64], %90 {strides = array<i32>} : memref<1x8x2xf32, #tpu.memory_space<vmem>>, vector<1x8x2xf32>,
    return
  }
  func.func @transform_0(%arg0: i32) -> (i32, i32, i32) {
    %c0_i32 = arith.constant 0 : i32
    %c0_i32_0 = arith.constant 0 : i32
    %c0_i32_1 = arith.constant 0 : i32
    return %arg0, %c0_i32, %c0_i32_0 : i32, i32, i32
  }
  func.func @transform_1(%arg0: i32) -> (i32, i32, i32) {
    %c0_i32 = arith.constant 0 : i32
    %c0_i32_0 = arith.constant 0 : i32
    %c0_i32_1 = arith.constant 0 : i32
    return %arg0, %c0_i32, %c0_i32_0 : i32, i32, i32
  }
  func.func @transform_2(%arg0: i32) -> (i32, i32, i32) {
    %c0_i32 = arith.constant 0 : i32
    %c0_i32_0 = arith.constant 0 : i32
    %c0_i32_1 = arith.constant 0 : i32
    return %arg0, %c0_i32, %c0_i32_0 : i32, i32, i32
  }
  func.func @transform_3(%arg0: i32) -> (i32, i32, i32) {
    %c0_i32 = arith.constant 0 : i32
    %c0_i32_0 = arith.constant 0 : i32
    %c0_i32_1 = arith.constant 0 : i32
    return %arg0, %c0_i32, %c0_i32_0 : i32, i32, i32
  }
  func.func @transform_4(%arg0: i32) -> (i32, i32) {
    %c0_i32 = arith.constant 0 : i32
    %c0_i32_0 = arith.constant 0 : i32
    %c0_i32_1 = arith.constant 0 : i32
    return %c0_i32, %c0_i32_0 : i32, i32
  }
  func.func @transform_5(%arg0: i32) -> (i32, i32) {
    %c0_i32 = arith.constant 0 : i32
    %c0_i32_0 = arith.constant 0 : i32
    %c0_i32_1 = arith.constant 0 : i32
    return %c0_i32, %c0_i32_0 : i32, i32
  }
  func.func @transform_6(%arg0: i32) -> (i32, i32) {
    %c0_i32 = arith.constant 0 : i32
    %c0_i32_0 = arith.constant 0 : i32
    %c0_i32_1 = arith.constant 0 : i32
    return %c0_i32, %c0_i32_0 : i32, i32
  }
  func.func @transform_7(%arg0: i32) -> (i32, i32) {
    %c0_i32 = arith.constant 0 : i32
    %c0_i32_0 = arith.constant 0 : i32
    %c0_i32_1 = arith.constant 0 : i32
    return %c0_i32, %c0_i32_0 : i32, i32
  }
  func.func @transform_8(%arg0: i32) -> (i32, i32) {
    %c0_i32 = arith.constant 0 : i32
    %c0_i32_0 = arith.constant 0 : i32
    %c0_i32_1 = arith.constant 0 : i32
    return %c0_i32, %c0_i32_0 : i32, i32
  }
  func.func @transform_9(%arg0: i32) -> (i32, i32) {
    %c0_i32 = arith.constant 0 : i32
    %c0_i32_0 = arith.constant 0 : i32
    %c0_i32_1 = arith.constant 0 : i32
    return %c0_i32, %c0_i32_0 : i32, i32
  }
  func.func @transform_10(%arg0: i32) -> (i32, i32) {
    %c0_i32 = arith.constant 0 : i32
    %c0_i32_0 = arith.constant 0 : i32
    %c0_i32_1 = arith.constant 0 : i32
    return %c0_i32, %c0_i32_0 : i32, i32
  }
  func.func @transform_11(%arg0: i32) -> (i32, i32) {
    %c0_i32 = arith.constant 0 : i32
    %c0_i32_0 = arith.constant 0 : i32
    %c0_i32_1 = arith.constant 0 : i32
    return %c0_i32, %c0_i32_0 : i32, i32
  }
  func.func @transform_12(%arg0: i32) -> (i32, i32) {
    %c0_i32 = arith.constant 0 : i32
    %c0_i32_0 = arith.constant 0 : i32
    %c0_i32_1 = arith.constant 0 : i32
    return %c0_i32, %c0_i32_0 : i32, i32
  }
  func.func @transform_13(%arg0: i32) -> (i32, i32) {
    %c0_i32 = arith.constant 0 : i32
    %c0_i32_0 = arith.constant 0 : i32
    %c0_i32_1 = arith.constant 0 : i32
    return %c0_i32, %c0_i32_0 : i32, i32
  }
  func.func @transform_14(%arg0: i32) -> (i32, i32) {
    %c0_i32 = arith.constant 0 : i32
    %c0_i32_0 = arith.constant 0 : i32
    %c0_i32_1 = arith.constant 0 : i32
    return %c0_i32, %c0_i32_0 : i32, i32
  }
  func.func @transform_15(%arg0: i32) -> (i32, i32) {
    %c0_i32 = arith.constant 0 : i32
    %c0_i32_0 = arith.constant 0 : i32
    %c0_i32_1 = arith.constant 0 : i32
    return %c0_i32, %c0_i32_0 : i32, i32
  }
  func.func @transform_16(%arg0: i32) -> (i32, i32, i32) {
    %c0_i32 = arith.constant 0 : i32
    %c0_i32_0 = arith.constant 0 : i32
    %c0_i32_1 = arith.constant 0 : i32
    return %arg0, %c0_i32, %c0_i32_0 : i32, i32, i32
  }
  func.func @transform_17(%arg0: i32) -> (i32, i32, i32) {
    %c0_i32 = arith.constant 0 : i32
    %c0_i32_0 = arith.constant 0 : i32
    %c0_i32_1 = arith.constant 0 : i32
    return %arg0, %c0_i32, %c0_i32_0 : i32, i32, i32
  }
  func.func @transform_18(%arg0: i32) -> (i32, i32, i32) {
    %c0_i32 = arith.constant 0 : i32
    %c0_i32_0 = arith.constant 0 : i32
    %c0_i32_1 = arith.constant 0 : i32
    return %arg0, %c0_i32, %c0_i32_0 : i32, i32, i32
  }
  func.func @transform_19(%arg0: i32) -> (i32, i32, i32) {
    %c0_i32 = arith.constant 0 : i32
    %c0_i32_0 = arith.constant 0 : i32
    %c0_i32_1 = arith.constant 0 : i32
    return %arg0, %c0_i32, %c0_i32_0 : i32, i32, i32
  }
}

</mosaic_0001>

<llo_original>
// kernel: tpu_custom_call.1
$region0: #{tpu_custom_call.1}
  #allocation0 [shape = 'u32[]', space=smem, size = 0x4, offset = 0x4, fixed_abs, tag = 'smem constant byte address 0x4 - core index']
  #allocation1 [shape = 'u32[144,128]{1,0:T(1,128)}', space=vmem, size = 0x12000, scoped, tag = 'internal scratch']
  %s0 = inlined_call_operand.vmem [shape: f32[3,8,28], index: 0, kind: input, shape index: {}]
  %s1 = inlined_call_operand.vmem [shape: f32[3,28,16], index: 1, kind: input, shape index: {}]
  %s2 = inlined_call_operand.vmem [shape: f32[3,1,16], index: 2, kind: input, shape index: {}]
  %s3 = inlined_call_operand.vmem [shape: f32[3,8,8], index: 3, kind: input, shape index: {}]
  %s4 = inlined_call_operand.vmem [shape: f32[16,32], index: 4, kind: input, shape index: {}]
  %s5 = inlined_call_operand.vmem [shape: f32[1,32], index: 5, kind: input, shape index: {}]
  %s6 = inlined_call_operand.vmem [shape: f32[32,24], index: 6, kind: input, shape index: {}]
  %s7 = inlined_call_operand.vmem [shape: f32[1,24], index: 7, kind: input, shape index: {}]
  %s8 = inlined_call_operand.vmem [shape: f32[24,24], index: 8, kind: input, shape index: {}]
  %s9 = inlined_call_operand.vmem [shape: f32[1,24], index: 9, kind: input, shape index: {}]
  %s10 = inlined_call_operand.vmem [shape: f32[24,2], index: 10, kind: input, shape index: {}]
  %s11 = inlined_call_operand.vmem [shape: f32[1,2], index: 11, kind: input, shape index: {}]
  %s12 = inlined_call_operand.vmem [shape: f32[16,16], index: 12, kind: input, shape index: {}]
  %s13 = inlined_call_operand.vmem [shape: f32[1,16], index: 13, kind: input, shape index: {}]
  %s14 = inlined_call_operand.vmem [shape: f32[16,2], index: 14, kind: input, shape index: {}]
  %s15 = inlined_call_operand.vmem [shape: f32[1,2], index: 15, kind: input, shape index: {}]
  %s16 = inlined_call_operand.hbm [shape: f32[3,8,16], index: 16, kind: output, shape index: {0}]
  %s17 = inlined_call_operand.hbm [shape: f32[3,8,24], index: 17, kind: output, shape index: {1}]
  %s18 = inlined_call_operand.vmem [shape: f32[3,8,2], index: 18, kind: output, shape index: {2}]
  %s19 = inlined_call_operand.vmem [shape: f32[3,8,2], index: 19, kind: output, shape index: {3}]
  %20 = xla_tuple %s16, %s17, %s18, %s19
  %s21 = sld [smem:[#allocation0]]
  $region121: #{tpu_custom_call.1} parent=0
    _
  %s23 = ssub.s32 1, %s21
  %s24 = scalar_select 0, %s23, %s21
  $region1: #{tpu_custom_call.1} parent=0
    #allocation2 [shape = 'u8[8192]{0}', space=vmem, size = 0x2000, scoped, tag = 'output window, operand 0']
    #allocation3 [shape = 's32[2]{0}', space=sflag, size = 0x8, scoped, tag = 'scoped memory for tpu_custom_call.1']
    #allocation4 [shape = 'u8[8192]{0}', space=vmem, size = 0x2000, scoped, tag = 'output window, operand 1']
    #allocation5 [shape = 's32[2]{0}', space=sflag, size = 0x8, scoped, tag = 'scoped memory for tpu_custom_call.1']
    %25 = vsyncpa [#allocation3], 0
    %s26 = scalar_lea.sflag [#allocation3], 1
    %27 = vsyncpa %s26, 0
    %28 = vsyncpa [#allocation5], 0
    %s29 = scalar_lea.sflag [#allocation5], 1
    %30 = vsyncpa %s29, 0
    loop: start=0, step=1, limit=5
    $region2: #{tpu_custom_call.1} parent=1 // loop_pre_header
      _
    $region3: #{tpu_custom_call.1} parent=1 // loop_header
      %s32 = sphi 0, %s36
      %p33 = scmp.ge.s32.totalorder %s32, 5
      %s42 = sphi 0, %s44
      %s45 = sphi 0, %s42
      %s46 = sphi 0, %s45
      %s62 = sphi 0, %s46
      %s68 = sphi 0, %s70
      %s71 = sphi 0, %s68
      %s72 = sphi 0, %s71
      %s88 = sphi 0, %s72
      %s94 = sphi 0, %s96
      %s97 = sphi 0, %s94
      %s98 = sphi 0, %s97
      %s114 = sphi 0, %s98
      %s120 = sphi 0, %s122
      %s123 = sphi 0, %s120
      %s124 = sphi 0, %s123
      %s140 = sphi 0, %s124
      %s144 = sphi 0, %s144
      %s146 = sphi 0, %s144
      %s147 = sphi 0, %s146
      %s161 = sphi 0, %s147
      %s165 = sphi 0, %s165
      %s167 = sphi 0, %s165
      %s168 = sphi 0, %s167
      %s182 = sphi 0, %s168
      %s186 = sphi 0, %s186
      %s188 = sphi 0, %s186
      %s189 = sphi 0, %s188
      %s203 = sphi 0, %s189
      %s207 = sphi 0, %s207
      %s209 = sphi 0, %s207
      %s210 = sphi 0, %s209
      %s224 = sphi 0, %s210
      %s228 = sphi 0, %s228
      %s230 = sphi 0, %s228
      %s231 = sphi 0, %s230
      %s245 = sphi 0, %s231
      %s249 = sphi 0, %s249
      %s251 = sphi 0, %s249
      %s252 = sphi 0, %s251
      %s266 = sphi 0, %s252
      %s270 = sphi 0, %s270
      %s272 = sphi 0, %s270
      %s273 = sphi 0, %s272
      %s287 = sphi 0, %s273
      %s291 = sphi 0, %s291
      %s293 = sphi 0, %s291
      %s294 = sphi 0, %s293
      %s308 = sphi 0, %s294
      %s312 = sphi 0, %s312
      %s314 = sphi 0, %s312
      %s315 = sphi 0, %s314
      %s329 = sphi 0, %s315
      %s333 = sphi 0, %s333
      %s335 = sphi 0, %s333
      %s336 = sphi 0, %s335
      %s350 = sphi 0, %s336
      %s354 = sphi 0, %s354
      %s356 = sphi 0, %s354
      %s357 = sphi 0, %s356
      %s371 = sphi 0, %s357
      %s375 = sphi 0, %s375
      %s377 = sphi 0, %s375
      %s378 = sphi 0, %s377
      %s392 = sphi 0, %s378
      %s398 = sphi 0, %s400
      %s401 = sphi 0, %s398
      %s402 = sphi 0, %s401
      %s418 = sphi 0, %s402
      %s424 = sphi 0, %s426
      %s427 = sphi 0, %s424
      %s428 = sphi 0, %s427
      %s444 = sphi 0, %s428
      %s450 = sphi 0, %s452
      %s453 = sphi 0, %s450
      %s454 = sphi 0, %s453
      %s470 = sphi 0, %s454
      %s476 = sphi 0, %s478
      %s479 = sphi 0, %s476
      %s480 = sphi 0, %s479
      %s496 = sphi 0, %s480
    $region4: #{tpu_custom_call.1} parent=1 // loop_header_branch
      %35 = sbr.rel (%p33) target = $region8
    $region5: #{tpu_custom_call.1} parent=1 // loop_body
      %s37 = ssub.s32 %s32, 1
      %s38 = ssub.s32 %s32, 2
      %s39 = sadd.s32 %s32, 1
      %s40 = ssub.s32 %s32, %s39
      %p41 = scmp.eq.s32.totalorder %s40, 0
      %s43 = sadd.s32 %s42, 1
      %s44 = scalar_select %p41, %s42, %s43
      %p47 = pneg %p41
      %p48 = scmp.eq.s32.totalorder %s32, 2
      %p49 = por %p47, %p48
      %p50 = scmp.ne.s32.totalorder %s42, %s45
      %p51 = scmp.eq.s32.totalorder %s32, 0
      %p52 = por %p50, %p51
      %p53 = scmp.ne.s32.totalorder %s42, %s45
      %p54 = scmp.eq.s32.totalorder %s37, 2
      %p55 = por %p53, %p54
      %p56 = scmp.ne.s32.totalorder %s45, %s46
      %p57 = scmp.eq.s32.totalorder %s37, 0
      %p58 = por %p56, %p57
      %p59 = scmp.ne.s32.totalorder %s45, %s46
      %p60 = scmp.eq.s32.totalorder %s38, 2
      %p61 = por %p59, %p60
      %p63 = scmp.ne.s32.totalorder %s46, %s62
      %p64 = scmp.eq.s32.totalorder %s38, 0
      %p65 = por %p63, %p64
      %s66 = ssub.s32 %s32, %s39
      %p67 = scmp.eq.s32.totalorder %s66, 0
      %s69 = sadd.s32 %s68, 1
      %s70 = scalar_select %p67, %s68, %s69
      %p73 = pneg %p67
      %p74 = scmp.eq.s32.totalorder %s32, 2
      %p75 = por %p73, %p74
      %p76 = scmp.ne.s32.totalorder %s68, %s71
      %p77 = scmp.eq.s32.totalorder %s32, 0
      %p78 = por %p76, %p77
      %p79 = scmp.ne.s32.totalorder %s68, %s71
      %p80 = scmp.eq.s32.totalorder %s37, 2
      %p81 = por %p79, %p80
      %p82 = scmp.ne.s32.totalorder %s71, %s72
      %p83 = scmp.eq.s32.totalorder %s37, 0
      %p84 = por %p82, %p83
      %p85 = scmp.ne.s32.totalorder %s71, %s72
      %p86 = scmp.eq.s32.totalorder %s38, 2
      %p87 = por %p85, %p86
      %p89 = scmp.ne.s32.totalorder %s72, %s88
      %p90 = scmp.eq.s32.totalorder %s38, 0
      %p91 = por %p89, %p90
      %s92 = ssub.s32 %s32, %s39
      %p93 = scmp.eq.s32.totalorder %s92, 0
      %s95 = sadd.s32 %s94, 1
      %s96 = scalar_select %p93, %s94, %s95
      %p99 = pneg %p93
      %p100 = scmp.eq.s32.totalorder %s32, 2
      %p101 = por %p99, %p100
      %p102 = scmp.ne.s32.totalorder %s94, %s97
      %p103 = scmp.eq.s32.totalorder %s32, 0
      %p104 = por %p102, %p103
      %p105 = scmp.ne.s32.totalorder %s94, %s97
      %p106 = scmp.eq.s32.totalorder %s37, 2
      %p107 = por %p105, %p106
      %p108 = scmp.ne.s32.totalorder %s97, %s98
      %p109 = scmp.eq.s32.totalorder %s37, 0
      %p110 = por %p108, %p109
      %p111 = scmp.ne.s32.totalorder %s97, %s98
      %p112 = scmp.eq.s32.totalorder %s38, 2
      %p113 = por %p111, %p112
      %p115 = scmp.ne.s32.totalorder %s98, %s114
      %p116 = scmp.eq.s32.totalorder %s38, 0
      %p117 = por %p115, %p116
      %s118 = ssub.s32 %s32, %s39
      %p119 = scmp.eq.s32.totalorder %s118, 0
      %s121 = sadd.s32 %s120, 1
      %s122 = scalar_select %p119, %s120, %s121
      %p125 = pneg %p119
      %p126 = scmp.eq.s32.totalorder %s32, 2
      %p127 = por %p125, %p126
      %p128 = scmp.ne.s32.totalorder %s120, %s123
      %p129 = scmp.eq.s32.totalorder %s32, 0
      %p130 = por %p128, %p129
      %p131 = scmp.ne.s32.totalorder %s120, %s123
      %p132 = scmp.eq.s32.totalorder %s37, 2
      %p133 = por %p131, %p132
      %p134 = scmp.ne.s32.totalorder %s123, %s124
      %p135 = scmp.eq.s32.totalorder %s37, 0
      %p136 = por %p134, %p135
      %p137 = scmp.ne.s32.totalorder %s123, %s124
      %p138 = scmp.eq.s32.totalorder %s38, 2
      %p139 = por %p137, %p138
      %p141 = scmp.ne.s32.totalorder %s124, %s140
      %p142 = scmp.eq.s32.totalorder %s38, 0
      %p143 = por %p141, %p142
      %s145 = sadd.s32 %s144, 1
      %p148 = scmp.eq.s32.totalorder %s32, 2
      %p149 = scmp.ne.s32.totalorder %s144, %s146
      %p150 = scmp.eq.s32.totalorder %s32, 0
      %p151 = por %p149, %p150
      %p152 = scmp.ne.s32.totalorder %s144, %s146
      %p153 = scmp.eq.s32.totalorder %s37, 2
      %p154 = por %p152, %p153
      %p155 = scmp.ne.s32.totalorder %s146, %s147
      %p156 = scmp.eq.s32.totalorder %s37, 0
      %p157 = por %p155, %p156
      %p158 = scmp.ne.s32.totalorder %s146, %s147
      %p159 = scmp.eq.s32.totalorder %s38, 2
      %p160 = por %p158, %p159
      %p162 = scmp.ne.s32.totalorder %s147, %s161
      %p163 = scmp.eq.s32.totalorder %s38, 0
      %p164 = por %p162, %p163
      %s166 = sadd.s32 %s165, 1
      %p169 = scmp.eq.s32.totalorder %s32, 2
      %p170 = scmp.ne.s32.totalorder %s165, %s167
      %p171 = scmp.eq.s32.totalorder %s32, 0
      %p172 = por %p170, %p171
      %p173 = scmp.ne.s32.totalorder %s165, %s167
      %p174 = scmp.eq.s32.totalorder %s37, 2
      %p175 = por %p173, %p174
      %p176 = scmp.ne.s32.totalorder %s167, %s168
      %p177 = scmp.eq.s32.totalorder %s37, 0
      %p178 = por %p176, %p177
      %p179 = scmp.ne.s32.totalorder %s167, %s168
      %p180 = scmp.eq.s32.totalorder %s38, 2
      %p181 = por %p179, %p180
      %p183 = scmp.ne.s32.totalorder %s168, %s182
      %p184 = scmp.eq.s32.totalorder %s38, 0
      %p185 = por %p183, %p184
      %s187 = sadd.s32 %s186, 1
      %p190 = scmp.eq.s32.totalorder %s32, 2
      %p191 = scmp.ne.s32.totalorder %s186, %s188
      %p192 = scmp.eq.s32.totalorder %s32, 0
      %p193 = por %p191, %p192
      %p194 = scmp.ne.s32.totalorder %s186, %s188
      %p195 = scmp.eq.s32.totalorder %s37, 2
      %p196 = por %p194, %p195
      %p197 = scmp.ne.s32.totalorder %s188, %s189
      %p198 = scmp.eq.s32.totalorder %s37, 0
      %p199 = por %p197, %p198
      %p200 = scmp.ne.s32.totalorder %s188, %s189
      %p201 = scmp.eq.s32.totalorder %s38, 2
      %p202 = por %p200, %p201
      %p204 = scmp.ne.s32.totalorder %s189, %s203
      %p205 = scmp.eq.s32.totalorder %s38, 0
      %p206 = por %p204, %p205
      %s208 = sadd.s32 %s207, 1
      %p211 = scmp.eq.s32.totalorder %s32, 2
      %p212 = scmp.ne.s32.totalorder %s207, %s209
      %p213 = scmp.eq.s32.totalorder %s32, 0
      %p214 = por %p212, %p213
      %p215 = scmp.ne.s32.totalorder %s207, %s209
      %p216 = scmp.eq.s32.totalorder %s37, 2
      %p217 = por %p215, %p216
      %p218 = scmp.ne.s32.totalorder %s209, %s210
      %p219 = scmp.eq.s32.totalorder %s37, 0
      %p220 = por %p218, %p219
      %p221 = scmp.ne.s32.totalorder %s209, %s210
      %p222 = scmp.eq.s32.totalorder %s38, 2
      %p223 = por %p221, %p222
      %p225 = scmp.ne.s32.totalorder %s210, %s224
      %p226 = scmp.eq.s32.totalorder %s38, 0
      %p227 = por %p225, %p226
      %s229 = sadd.s32 %s228, 1
      %p232 = scmp.eq.s32.totalorder %s32, 2
      %p233 = scmp.ne.s32.totalorder %s228, %s230
      %p234 = scmp.eq.s32.totalorder %s32, 0
      %p235 = por %p233, %p234
      %p236 = scmp.ne.s32.totalorder %s228, %s230
      %p237 = scmp.eq.s32.totalorder %s37, 2
      %p238 = por %p236, %p237
      %p239 = scmp.ne.s32.totalorder %s230, %s231
      %p240 = scmp.eq.s32.totalorder %s37, 0
      %p241 = por %p239, %p240
      %p242 = scmp.ne.s32.totalorder %s230, %s231
      %p243 = scmp.eq.s32.totalorder %s38, 2
      %p244 = por %p242, %p243
      %p246 = scmp.ne.s32.totalorder %s231, %s245
      %p247 = scmp.eq.s32.totalorder %s38, 0
      %p248 = por %p246, %p247
      %s250 = sadd.s32 %s249, 1
      %p253 = scmp.eq.s32.totalorder %s32, 2
      %p254 = scmp.ne.s32.totalorder %s249, %s251
      %p255 = scmp.eq.s32.totalorder %s32, 0
      %p256 = por %p254, %p255
      %p257 = scmp.ne.s32.totalorder %s249, %s251
      %p258 = scmp.eq.s32.totalorder %s37, 2
      %p259 = por %p257, %p258
      %p260 = scmp.ne.s32.totalorder %s251, %s252
      %p261 = scmp.eq.s32.totalorder %s37, 0
      %p262 = por %p260, %p261
      %p263 = scmp.ne.s32.totalorder %s251, %s252
      %p264 = scmp.eq.s32.totalorder %s38, 2
      %p265 = por %p263, %p264
      %p267 = scmp.ne.s32.totalorder %s252, %s266
      %p268 = scmp.eq.s32.totalorder %s38, 0
      %p269 = por %p267, %p268
      %s271 = sadd.s32 %s270, 1
      %p274 = scmp.eq.s32.totalorder %s32, 2
      %p275 = scmp.ne.s32.totalorder %s270, %s272
      %p276 = scmp.eq.s32.totalorder %s32, 0
      %p277 = por %p275, %p276
      %p278 = scmp.ne.s32.totalorder %s270, %s272
      %p279 = scmp.eq.s32.totalorder %s37, 2
      %p280 = por %p278, %p279
      %p281 = scmp.ne.s32.totalorder %s272, %s273
      %p282 = scmp.eq.s32.totalorder %s37, 0
      %p283 = por %p281, %p282
      %p284 = scmp.ne.s32.totalorder %s272, %s273
      %p285 = scmp.eq.s32.totalorder %s38, 2
      %p286 = por %p284, %p285
      %p288 = scmp.ne.s32.totalorder %s273, %s287
      %p289 = scmp.eq.s32.totalorder %s38, 0
      %p290 = por %p288, %p289
      %s292 = sadd.s32 %s291, 1
      %p295 = scmp.eq.s32.totalorder %s32, 2
      %p296 = scmp.ne.s32.totalorder %s291, %s293
      %p297 = scmp.eq.s32.totalorder %s32, 0
      %p298 = por %p296, %p297
      %p299 = scmp.ne.s32.totalorder %s291, %s293
      %p300 = scmp.eq.s32.totalorder %s37, 2
      %p301 = por %p299, %p300
      %p302 = scmp.ne.s32.totalorder %s293, %s294
      %p303 = scmp.eq.s32.totalorder %s37, 0
      %p304 = por %p302, %p303
      %p305 = scmp.ne.s32.totalorder %s293, %s294
      %p306 = scmp.eq.s32.totalorder %s38, 2
      %p307 = por %p305, %p306
      %p309 = scmp.ne.s32.totalorder %s294, %s308
      %p310 = scmp.eq.s32.totalorder %s38, 0
      %p311 = por %p309, %p310
      %s313 = sadd.s32 %s312, 1
      %p316 = scmp.eq.s32.totalorder %s32, 2
      %p317 = scmp.ne.s32.totalorder %s312, %s314
      %p318 = scmp.eq.s32.totalorder %s32, 0
      %p319 = por %p317, %p318
      %p320 = scmp.ne.s32.totalorder %s312, %s314
      %p321 = scmp.eq.s32.totalorder %s37, 2
      %p322 = por %p320, %p321
      %p323 = scmp.ne.s32.totalorder %s314, %s315
      %p324 = scmp.eq.s32.totalorder %s37, 0
      %p325 = por %p323, %p324
      %p326 = scmp.ne.s32.totalorder %s314, %s315
      %p327 = scmp.eq.s32.totalorder %s38, 2
      %p328 = por %p326, %p327
      %p330 = scmp.ne.s32.totalorder %s315, %s329
      %p331 = scmp.eq.s32.totalorder %s38, 0
      %p332 = por %p330, %p331
      %s334 = sadd.s32 %s333, 1
      %p337 = scmp.eq.s32.totalorder %s32, 2
      %p338 = scmp.ne.s32.totalorder %s333, %s335
      %p339 = scmp.eq.s32.totalorder %s32, 0
      %p340 = por %p338, %p339
      %p341 = scmp.ne.s32.totalorder %s333, %s335
      %p342 = scmp.eq.s32.totalorder %s37, 2
      %p343 = por %p341, %p342
      %p344 = scmp.ne.s32.totalorder %s335, %s336
      %p345 = scmp.eq.s32.totalorder %s37, 0
      %p346 = por %p344, %p345
      %p347 = scmp.ne.s32.totalorder %s335, %s336
      %p348 = scmp.eq.s32.totalorder %s38, 2
      %p349 = por %p347, %p348
      %p351 = scmp.ne.s32.totalorder %s336, %s350
      %p352 = scmp.eq.s32.totalorder %s38, 0
      %p353 = por %p351, %p352
      %s355 = sadd.s32 %s354, 1
      %p358 = scmp.eq.s32.totalorder %s32, 2
      %p359 = scmp.ne.s32.totalorder %s354, %s356
      %p360 = scmp.eq.s32.totalorder %s32, 0
      %p361 = por %p359, %p360
      %p362 = scmp.ne.s32.totalorder %s354, %s356
      %p363 = scmp.eq.s32.totalorder %s37, 2
      %p364 = por %p362, %p363
      %p365 = scmp.ne.s32.totalorder %s356, %s357
      %p366 = scmp.eq.s32.totalorder %s37, 0
      %p367 = por %p365, %p366
      %p368 = scmp.ne.s32.totalorder %s356, %s357
      %p369 = scmp.eq.s32.totalorder %s38, 2
      %p370 = por %p368, %p369
      %p372 = scmp.ne.s32.totalorder %s357, %s371
      %p373 = scmp.eq.s32.totalorder %s38, 0
      %p374 = por %p372, %p373
      %s376 = sadd.s32 %s375, 1
      %p379 = scmp.eq.s32.totalorder %s32, 2
      %p380 = scmp.ne.s32.totalorder %s375, %s377
      %p381 = scmp.eq.s32.totalorder %s32, 0
      %p382 = por %p380, %p381
      %p383 = scmp.ne.s32.totalorder %s375, %s377
      %p384 = scmp.eq.s32.totalorder %s37, 2
      %p385 = por %p383, %p384
      %p386 = scmp.ne.s32.totalorder %s377, %s378
      %p387 = scmp.eq.s32.totalorder %s37, 0
      %p388 = por %p386, %p387
      %p389 = scmp.ne.s32.totalorder %s377, %s378
      %p390 = scmp.eq.s32.totalorder %s38, 2
      %p391 = por %p389, %p390
      %p393 = scmp.ne.s32.totalorder %s378, %s392
      %p394 = scmp.eq.s32.totalorder %s38, 0
      %p395 = por %p393, %p394
      %s396 = ssub.s32 %s32, %s39
      %p397 = scmp.eq.s32.totalorder %s396, 0
      %s399 = sadd.s32 %s398, 1
      %s400 = scalar_select %p397, %s398, %s399
      %p403 = pneg %p397
      %p404 = scmp.eq.s32.totalorder %s32, 2
      %p405 = por %p403, %p404
      %p406 = scmp.ne.s32.totalorder %s398, %s401
      %p407 = scmp.eq.s32.totalorder %s32, 0
      %p408 = por %p406, %p407
      %p409 = scmp.ne.s32.totalorder %s398, %s401
      %p410 = scmp.eq.s32.totalorder %s37, 2
      %p411 = por %p409, %p410
      %p412 = scmp.ne.s32.totalorder %s401, %s402
      %p413 = scmp.eq.s32.totalorder %s37, 0
      %p414 = por %p412, %p413
      %p415 = scmp.ne.s32.totalorder %s401, %s402
      %p416 = scmp.eq.s32.totalorder %s38, 2
      %p417 = por %p415, %p416
      %p419 = scmp.ne.s32.totalorder %s402, %s418
      %p420 = scmp.eq.s32.totalorder %s38, 0
      %p421 = por %p419, %p420
      %s422 = ssub.s32 %s32, %s39
      %p423 = scmp.eq.s32.totalorder %s422, 0
      %s425 = sadd.s32 %s424, 1
      %s426 = scalar_select %p423, %s424, %s425
      %p429 = pneg %p423
      %p430 = scmp.eq.s32.totalorder %s32, 2
      %p431 = por %p429, %p430
      %p432 = scmp.ne.s32.totalorder %s424, %s427
      %p433 = scmp.eq.s32.totalorder %s32, 0
      %p434 = por %p432, %p433
      %p435 = scmp.ne.s32.totalorder %s424, %s427
      %p436 = scmp.eq.s32.totalorder %s37, 2
      %p437 = por %p435, %p436
      %p438 = scmp.ne.s32.totalorder %s427, %s428
      %p439 = scmp.eq.s32.totalorder %s37, 0
      %p440 = por %p438, %p439
      %p441 = scmp.ne.s32.totalorder %s427, %s428
      %p442 = scmp.eq.s32.totalorder %s38, 2
      %p443 = por %p441, %p442
      %p445 = scmp.ne.s32.totalorder %s428, %s444
      %p446 = scmp.eq.s32.totalorder %s38, 0
      %p447 = por %p445, %p446
      %s448 = ssub.s32 %s32, %s39
      %p449 = scmp.eq.s32.totalorder %s448, 0
      %s451 = sadd.s32 %s450, 1
      %s452 = scalar_select %p449, %s450, %s451
      %p455 = pneg %p449
      %p456 = scmp.eq.s32.totalorder %s32, 2
      %p457 = por %p455, %p456
      %p458 = scmp.ne.s32.totalorder %s450, %s453
      %p459 = scmp.eq.s32.totalorder %s32, 0
      %p460 = por %p458, %p459
      %p461 = scmp.ne.s32.totalorder %s450, %s453
      %p462 = scmp.eq.s32.totalorder %s37, 2
      %p463 = por %p461, %p462
      %p464 = scmp.ne.s32.totalorder %s453, %s454
      %p465 = scmp.eq.s32.totalorder %s37, 0
      %p466 = por %p464, %p465
      %p467 = scmp.ne.s32.totalorder %s453, %s454
      %p468 = scmp.eq.s32.totalorder %s38, 2
      %p469 = por %p467, %p468
      %p471 = scmp.ne.s32.totalorder %s454, %s470
      %p472 = scmp.eq.s32.totalorder %s38, 0
      %p473 = por %p471, %p472
      %s474 = ssub.s32 %s32, %s39
      %p475 = scmp.eq.s32.totalorder %s474, 0
      %s477 = sadd.s32 %s476, 1
      %s478 = scalar_select %p475, %s476, %s477
      %p481 = pneg %p475
      %p482 = scmp.eq.s32.totalorder %s32, 2
      %p483 = por %p481, %p482
      %p484 = scmp.ne.s32.totalorder %s476, %s479
      %p485 = scmp.eq.s32.totalorder %s32, 0
      %p486 = por %p484, %p485
      %p487 = scmp.ne.s32.totalorder %s476, %s479
      %p488 = scmp.eq.s32.totalorder %s37, 2
      %p489 = por %p487, %p488
      %p490 = scmp.ne.s32.totalorder %s479, %s480
      %p491 = scmp.eq.s32.totalorder %s37, 0
      %p492 = por %p490, %p491
      %p493 = scmp.ne.s32.totalorder %s479, %s480
      %p494 = scmp.eq.s32.totalorder %s38, 2
      %p495 = por %p493, %p494
      %p497 = scmp.ne.s32.totalorder %s480, %s496
      %p498 = scmp.eq.s32.totalorder %s38, 0
      %p499 = por %p497, %p498
      %p500 = scmp.le.s32.totalorder 1, %s32
      %p501 = scmp.lt.s32.totalorder %s32, 4
      %p502 = pnand %p500, %p501
      %p503 = pneg %p502
      // Predicated region
      $region9: #{tpu_custom_call.1} parent=5 // pred_check
        _
      $region10: #{tpu_custom_call.1} parent=5 // pred_check_branch
        %505 = sbr.rel (%p502) target = $region12
      $region11: #{tpu_custom_call.1} parent=5 // pred_region
        %s506 = ssub.s32 %s32, 1
        // Predicated region
        $region13: #{tpu_custom_call.1} parent=11 // pred_check
          %p507 = pneg %p157
        $region14: #{tpu_custom_call.1} parent=11 // pred_check_branch
          %509 = sbr.rel (%p507) target = $region16
        $region15: #{tpu_custom_call.1} parent=11 // pred_region
          _
        $region16: #{tpu_custom_call.1} parent=11 // pred_fallthru
          _
        // Predicated region
        $region17: #{tpu_custom_call.1} parent=11 // pred_check
          %p510 = pneg %p178
        $region18: #{tpu_custom_call.1} parent=11 // pred_check_branch
          %512 = sbr.rel (%p510) target = $region20
        $region19: #{tpu_custom_call.1} parent=11 // pred_region
          _
        $region20: #{tpu_custom_call.1} parent=11 // pred_fallthru
          _
        // Predicated region
        $region21: #{tpu_custom_call.1} parent=11 // pred_check
          %p513 = pneg %p199
        $region22: #{tpu_custom_call.1} parent=11 // pred_check_branch
          %515 = sbr.rel (%p513) target = $region24
        $region23: #{tpu_custom_call.1} parent=11 // pred_region
          _
        $region24: #{tpu_custom_call.1} parent=11 // pred_fallthru
          _
        // Predicated region
        $region25: #{tpu_custom_call.1} parent=11 // pred_check
          %p516 = pneg %p220
        $region26: #{tpu_custom_call.1} parent=11 // pred_check_branch
          %518 = sbr.rel (%p516) target = $region28
        $region27: #{tpu_custom_call.1} parent=11 // pred_region
          _
        $region28: #{tpu_custom_call.1} parent=11 // pred_fallthru
          _
        // Predicated region
        $region29: #{tpu_custom_call.1} parent=11 // pred_check
          %p519 = pneg %p241
        $region30: #{tpu_custom_call.1} parent=11 // pred_check_branch
          %521 = sbr.rel (%p519) target = $region32
        $region31: #{tpu_custom_call.1} parent=11 // pred_region
          _
        $region32: #{tpu_custom_call.1} parent=11 // pred_fallthru
          _
        // Predicated region
        $region33: #{tpu_custom_call.1} parent=11 // pred_check
          %p522 = pneg %p262
        $region34: #{tpu_custom_call.1} parent=11 // pred_check_branch
          %524 = sbr.rel (%p522) target = $region36
        $region35: #{tpu_custom_call.1} parent=11 // pred_region
          _
        $region36: #{tpu_custom_call.1} parent=11 // pred_fallthru
          _
        // Predicated region
        $region37: #{tpu_custom_call.1} parent=11 // pred_check
          %p525 = pneg %p283
        $region38: #{tpu_custom_call.1} parent=11 // pred_check_branch
          %527 = sbr.rel (%p525) target = $region40
        $region39: #{tpu_custom_call.1} parent=11 // pred_region
          _
        $region40: #{tpu_custom_call.1} parent=11 // pred_fallthru
          _
        // Predicated region
        $region41: #{tpu_custom_call.1} parent=11 // pred_check
          %p528 = pneg %p304
        $region42: #{tpu_custom_call.1} parent=11 // pred_check_branch
          %530 = sbr.rel (%p528) target = $region44
        $region43: #{tpu_custom_call.1} parent=11 // pred_region
          _
        $region44: #{tpu_custom_call.1} parent=11 // pred_fallthru
          _
        // Predicated region
        $region45: #{tpu_custom_call.1} parent=11 // pred_check
          %p531 = pneg %p325
        $region46: #{tpu_custom_call.1} parent=11 // pred_check_branch
          %533 = sbr.rel (%p531) target = $region48
        $region47: #{tpu_custom_call.1} parent=11 // pred_region
          _
        $region48: #{tpu_custom_call.1} parent=11 // pred_fallthru
          _
        // Predicated region
        $region49: #{tpu_custom_call.1} parent=11 // pred_check
          %p534 = pneg %p346
        $region50: #{tpu_custom_call.1} parent=11 // pred_check_branch
          %536 = sbr.rel (%p534) target = $region52
        $region51: #{tpu_custom_call.1} parent=11 // pred_region
          _
        $region52: #{tpu_custom_call.1} parent=11 // pred_fallthru
          _
        // Predicated region
        $region53: #{tpu_custom_call.1} parent=11 // pred_check
          %p537 = pneg %p367
        $region54: #{tpu_custom_call.1} parent=11 // pred_check_branch
          %539 = sbr.rel (%p537) target = $region56
        $region55: #{tpu_custom_call.1} parent=11 // pred_region
          _
        $region56: #{tpu_custom_call.1} parent=11 // pred_fallthru
          _
        // Predicated region
        $region57: #{tpu_custom_call.1} parent=11 // pred_check
          %p540 = pneg %p388
        $region58: #{tpu_custom_call.1} parent=11 // pred_check_branch
          %542 = sbr.rel (%p540) target = $region60
        $region59: #{tpu_custom_call.1} parent=11 // pred_region
          _
        $region60: #{tpu_custom_call.1} parent=11 // pred_fallthru
          _
      $region12: #{tpu_custom_call.1} parent=5 // pred_fallthru
        _
      %p543 = scmp.lt.s32.totalorder %s32, 3
      // Predicated region
      $region61: #{tpu_custom_call.1} parent=5 // pred_check
        %p544 = pneg %p543
      $region62: #{tpu_custom_call.1} parent=5 // pred_check_branch
        %546 = sbr.rel (%p544) target = $region64
      $region63: #{tpu_custom_call.1} parent=5 // pred_region
        // Predicated region
        $region65: #{tpu_custom_call.1} parent=63 // pred_check
          %p547 = pneg %p52
        $region66: #{tpu_custom_call.1} parent=63 // pred_check_branch
          %549 = sbr.rel (%p547) target = $region68
        $region67: #{tpu_custom_call.1} parent=63 // pred_region
          %p550 = scmp.lt.s32.totalorder %s32, 2
          %s551 = scalar_select %p550, %s32, 2
          %s552 = smul.addr %s551, 8
          %s553 = scalar_lea.vmem %s0, %s552
        $region68: #{tpu_custom_call.1} parent=63 // pred_fallthru
          _
        // Predicated region
        $region69: #{tpu_custom_call.1} parent=63 // pred_check
          %p554 = pneg %p78
        $region70: #{tpu_custom_call.1} parent=63 // pred_check_branch
          %556 = sbr.rel (%p554) target = $region72
        $region71: #{tpu_custom_call.1} parent=63 // pred_region
          %p557 = scmp.lt.s32.totalorder %s32, 2
          %s558 = scalar_select %p557, %s32, 2
          %s559 = smul.addr %s558, 4
          %s560 = smul.addr %s559, 8
          %s561 = scalar_lea.vmem %s1, %s560
        $region72: #{tpu_custom_call.1} parent=63 // pred_fallthru
          _
        // Predicated region
        $region73: #{tpu_custom_call.1} parent=63 // pred_check
          %p562 = pneg %p104
        $region74: #{tpu_custom_call.1} parent=63 // pred_check_branch
          %564 = sbr.rel (%p562) target = $region76
        $region75: #{tpu_custom_call.1} parent=63 // pred_region
          %p565 = scmp.lt.s32.totalorder %s32, 2
          %s566 = scalar_select %p565, %s32, 2
          %s567 = scalar_lea.vmem %s2, %s566
        $region76: #{tpu_custom_call.1} parent=63 // pred_fallthru
          _
        // Predicated region
        $region77: #{tpu_custom_call.1} parent=63 // pred_check
          %p568 = pneg %p130
        $region78: #{tpu_custom_call.1} parent=63 // pred_check_branch
          %570 = sbr.rel (%p568) target = $region80
        $region79: #{tpu_custom_call.1} parent=63 // pred_region
          %p571 = scmp.lt.s32.totalorder %s32, 2
          %s572 = scalar_select %p571, %s32, 2
          %s573 = smul.addr %s572, 8
          %s574 = scalar_lea.vmem %s3, %s573
        $region80: #{tpu_custom_call.1} parent=63 // pred_fallthru
          _
      $region64: #{tpu_custom_call.1} parent=5 // pred_fallthru
        _
      %p575 = scmp.le.s32.totalorder 1, %s32
      %p576 = scmp.lt.s32.totalorder %s32, 4
      %p577 = pnand %p575, %p576
      %p578 = pneg %p577
      // Predicated region
      $region81: #{tpu_custom_call.1} parent=5 // pred_check
        _
      $region82: #{tpu_custom_call.1} parent=5 // pred_check_branch
        %580 = sbr.rel (%p577) target = $region84
      $region83: #{tpu_custom_call.1} parent=5 // pred_region
        %s581 = ssub.s32 %s32, 1
        %p582 = scmp.lt.s32.totalorder %s37, 2
        %s583 = scalar_select %p582, %s37, 2
        %s584 = smul.addr %s583, 8
        %s585 = scalar_lea.vmem %s0, %s584
        %p586 = pneg %p58
        %p587 = pneg %p55
        %p588 = scmp.lt.s32.totalorder %s37, 2
        %s589 = scalar_select %p588, %s37, 2
        %s590 = smul.addr %s589, 4
        %s591 = smul.addr %s590, 8
        %s592 = scalar_lea.vmem %s1, %s591
        %p593 = pneg %p84
        %p594 = pneg %p81
        %p595 = scmp.lt.s32.totalorder %s37, 2
        %s596 = scalar_select %p595, %s37, 2
        %s597 = scalar_lea.vmem %s2, %s596
        %p598 = pneg %p110
        %p599 = pneg %p107
        %p600 = scmp.lt.s32.totalorder %s37, 2
        %s601 = scalar_select %p600, %s37, 2
        %s602 = smul.addr %s601, 8
        %s603 = scalar_lea.vmem %s3, %s602
        %p604 = pneg %p136
        %p605 = pneg %p133
        %p606 = pneg %p157
        %p607 = pneg %p154
        %p608 = pneg %p178
        %p609 = pneg %p175
        %p610 = pneg %p199
        %p611 = pneg %p196
        %p612 = pneg %p220
        %p613 = pneg %p217
        %p614 = pneg %p241
        %p615 = pneg %p238
        %p616 = pneg %p262
        %p617 = pneg %p259
        %p618 = pneg %p283
        %p619 = pneg %p280
        %p620 = pneg %p304
        %p621 = pneg %p301
        %p622 = pneg %p325
        %p623 = pneg %p322
        %p624 = pneg %p346
        %p625 = pneg %p343
        %p626 = pneg %p367
        %p627 = pneg %p364
        %p628 = pneg %p388
        %p629 = pneg %p385
        %p630 = pneg %p414
        %p631 = pneg %p411
        %s632 = sand.u32 %s401, 1
        %s633 = scalar_lea.sflag [#allocation3], %s632
        %s634 = sand.u32 %s401, 1
        %s635 = smul.addr %s634, 8
        %s636 = scalar_lea.vmem [#allocation2], %s635
        %p637 = pneg %p440
        %p638 = pneg %p437
        %s639 = sand.u32 %s427, 1
        %s640 = scalar_lea.sflag [#allocation5], %s639
        %s641 = sand.u32 %s427, 1
        %s642 = smul.addr %s641, 8
        %s643 = scalar_lea.vmem [#allocation4], %s642
        %p644 = pneg %p466
        %p645 = pneg %p463
        %p646 = scmp.lt.s32.totalorder %s37, 2
        %s647 = scalar_select %p646, %s37, 2
        %s648 = smul.addr %s647, 8
        %s649 = scalar_lea.vmem %s18, %s648
        %p650 = pneg %p492
        %p651 = pneg %p489
        %p652 = scmp.lt.s32.totalorder %s37, 2
        %s653 = scalar_select %p652, %s37, 2
        %s654 = smul.addr %s653, 8
        %s655 = scalar_lea.vmem %s19, %s654
        %p656 = scmp.lt.s32.totalorder %s37, 2
        %s657 = scalar_select %p656, %s37, 2
        %s658 = smul.addr %s657, 8
        %s659 = scalar_lea.vmem %s0, %s658
        %p660 = scmp.lt.s32.totalorder %s37, 2
        %s661 = scalar_select %p660, %s37, 2
        %s662 = smul.addr %s661, 4
        %s663 = smul.addr %s662, 8
        %s664 = scalar_lea.vmem %s1, %s663
        %p665 = scmp.lt.s32.totalorder %s37, 2
        %s666 = scalar_select %p665, %s37, 2
        %s667 = scalar_lea.vmem %s2, %s666
        %p668 = scmp.lt.s32.totalorder %s37, 2
        %s669 = scalar_select %p668, %s37, 2
        %s670 = smul.addr %s669, 8
        %s671 = scalar_lea.vmem %s3, %s670
        %p672 = scmp.lt.s32.totalorder %s37, 2
        %s673 = scalar_select %p672, %s37, 2
        %s674 = smul.addr %s673, 8
        %s675 = scalar_lea.vmem %s18, %s674
        %p676 = scmp.lt.s32.totalorder %s37, 2
        %s677 = scalar_select %p676, %s37, 2
        %s678 = smul.addr %s677, 8
        %s679 = scalar_lea.vmem %s19, %s678
        %v680 = vld [vmem:[%s659] sm:$0xff]
        %v681 = vld [vmem:[%s671] sm:$0xff]
        %v682 = vld [vmem:[%s664] sm:$0xff]
        %v683 = vld [vmem:[%s664 + $0x8] sm:$0xff]
        %v684 = vld [vmem:[%s664 + $0x10] sm:$0xff]
        %v685 = vld [vmem:[%s664 + $0x18] sm:$0xf]
        %v686 = vld [vmem:[%s667] sm:$0x1]
        %v688 = vlaneseq
        %v689 = vshrl.u32 %v688, 7
        %v690 = vsub.s32 0, %v689
        %v691 = vrot.slane %v686, %v690
        %vm693 = vcmask 228352
        %v695 = vsel %vm693, %v680, 0
        %vm697 = vcmask 1043456
        %v699 = vsel %vm697, %v685, 0
        %701 = vmatprep.subr.mxu0 0.0
        %702 = vmatpush1.msra.mxu0 %v682
        %703 = vmatprep.subr.mxu0 0.0
        %704 = vmatpush1.msra.mxu0 %v683
        %705 = vmatprep.subr.mxu0 0.0
        %706 = vmatpush1.msra.mxu0 %v684
        %707 = vmatprep.subr.mxu0 0.0
        %708 = vmatpush1.msra.mxu0 %v699
        %709 = vmatprep.subr.mxu0 0.0
        %710 = vmatpush1.msra.mxu0 0.0
        %711 = vmatprep.subr.mxu0 0.0
        %712 = vmatpush1.msra.mxu0 0.0
        %713 = vmatprep.subr.mxu0 0.0
        %714 = vmatpush1.msra.mxu0 0.0
        %715 = vmatprep.subr.mxu0 0.0
        %716 = vmatpush1.msra.mxu0 0.0
        %717 = vmatprep.subr.mxu0 0.0
        %718 = vmatpush1.msra.mxu0 0.0
        %719 = vmatprep.subr.mxu0 0.0
        %720 = vmatpush1.msra.mxu0 0.0
        %721 = vmatprep.subr.mxu0 0.0
        %722 = vmatpush1.msra.mxu0 0.0
        %723 = vmatprep.subr.mxu0 0.0
        %724 = vmatpush1.msra.mxu0 0.0
        %725 = vmatprep.subr.mxu0 0.0
        %726 = vmatpush1.msra.mxu0 0.0
        %727 = vmatprep.subr.mxu0 0.0
        %728 = vmatpush1.msra.mxu0 0.0
        %729 = vmatprep.subr.mxu0 0.0
        %730 = vmatpush1.msra.mxu0 0.0
        %731 = vmatprep.subr.mxu0 0.0
        %732 = vmatpush1.msra.mxu0 0.0
        %733 = vmatprep.subr.mxu0 0.0
        %734 = vmatpush1.msra.mxu0 0.0
        %735 = vmatprep.subr.mxu0 0.0
        %736 = vmatpush1.msra.mxu0 0.0
        %737 = vmatprep.subr.mxu0 0.0
        %738 = vmatpush1.msra.mxu0 0.0
        %739 = vmatprep.subr.mxu0 0.0
        %740 = vmatpush1.msra.mxu0 0.0
        %741 = vmatprep.subr.mxu0 0.0
        %742 = vmatpush1.msra.mxu0 0.0
        %743 = vmatprep.subr.mxu0 0.0
        %744 = vmatpush1.msra.mxu0 0.0
        %745 = vmatprep.subr.mxu0 0.0
        %746 = vmatpush1.msra.mxu0 0.0
        %747 = vmatprep.subr.mxu0 0.0
        %748 = vmatpush1.msra.mxu0 0.0
        %749 = vmatprep.subr.mxu0 0.0
        %750 = vmatpush1.msra.mxu0 0.0
        %751 = vmatprep.subr.mxu0 0.0
        %752 = vmatpush1.msra.mxu0 0.0
        %753 = vmatprep.subr.mxu0 0.0
        %754 = vmatpush1.msra.mxu0 0.0
        %755 = vmatprep.subr.mxu0 0.0
        %756 = vmatpush1.msra.mxu0 0.0
        %757 = vmatprep.subr.mxu0 0.0
        %758 = vmatpush1.msra.mxu0 0.0
        %759 = vmatprep.subr.mxu0 0.0
        %760 = vmatpush1.msra.mxu0 0.0
        %761 = vmatprep.subr.mxu0 0.0
        %762 = vmatpush1.msra.mxu0 0.0
        %763 = vmatprep.subr.mxu0 0.0
        %764 = vmatpush1.msra.mxu0 0.0
        %765 = vmatprep.mubr.f32.mxu0 0.0
        %766 = vmatmul.mubr.f32.gmra.mrb[0].mxu0 %v695
        %v767 = vpop.f32.mrb[0].mxu0
        %v768 = vadd.f32 %v691, %v767
        %v769 = vpop.f32.mrb[0].mxu0
        %770 = vdwg.mxu0
        %v771 = vld [vmem:[%s4] sm:$0xff]
        %v772 = vld [vmem:[%s4 + $0x8] sm:$0xff]
        %v773 = vld [vmem:[%s5] sm:$0x1]
        %vm774 = vcmask 130048
        %v776 = vsel %vm774, %v768, 0
        %778 = vmatprep.subr.mxu0 0.0
        %779 = vmatpush1.msra.mxu0 %v771
        %780 = vmatprep.subr.mxu0 0.0
        %781 = vmatpush1.msra.mxu0 %v772
        %782 = vmatprep.subr.mxu0 0.0
        %783 = vmatpush1.msra.mxu0 0.0
        %784 = vmatprep.subr.mxu0 0.0
        %785 = vmatpush1.msra.mxu0 0.0
        %786 = vmatprep.subr.mxu0 0.0
        %787 = vmatpush1.msra.mxu0 0.0
        %788 = vmatprep.subr.mxu0 0.0
        %789 = vmatpush1.msra.mxu0 0.0
        %790 = vmatprep.subr.mxu0 0.0
        %791 = vmatpush1.msra.mxu0 0.0
        %792 = vmatprep.subr.mxu0 0.0
        %793 = vmatpush1.msra.mxu0 0.0
        %794 = vmatprep.subr.mxu0 0.0
        %795 = vmatpush1.msra.mxu0 0.0
        %796 = vmatprep.subr.mxu0 0.0
        %797 = vmatpush1.msra.mxu0 0.0
        %798 = vmatprep.subr.mxu0 0.0
        %799 = vmatpush1.msra.mxu0 0.0
        %800 = vmatprep.subr.mxu0 0.0
        %801 = vmatpush1.msra.mxu0 0.0
        %802 = vmatprep.subr.mxu0 0.0
        %803 = vmatpush1.msra.mxu0 0.0
        %804 = vmatprep.subr.mxu0 0.0
        %805 = vmatpush1.msra.mxu0 0.0
        %806 = vmatprep.subr.mxu0 0.0
        %807 = vmatpush1.msra.mxu0 0.0
        %808 = vmatprep.subr.mxu0 0.0
        %809 = vmatpush1.msra.mxu0 0.0
        %810 = vmatprep.subr.mxu0 0.0
        %811 = vmatpush1.msra.mxu0 0.0
        %812 = vmatprep.subr.mxu0 0.0
        %813 = vmatpush1.msra.mxu0 0.0
        %814 = vmatprep.subr.mxu0 0.0
        %815 = vmatpush1.msra.mxu0 0.0
        %816 = vmatprep.subr.mxu0 0.0
        %817 = vmatpush1.msra.mxu0 0.0
        %818 = vmatprep.subr.mxu0 0.0
        %819 = vmatpush1.msra.mxu0 0.0
        %820 = vmatprep.subr.mxu0 0.0
        %821 = vmatpush1.msra.mxu0 0.0
        %822 = vmatprep.subr.mxu0 0.0
        %823 = vmatpush1.msra.mxu0 0.0
        %824 = vmatprep.subr.mxu0 0.0
        %825 = vmatpush1.msra.mxu0 0.0
        %826 = vmatprep.subr.mxu0 0.0
        %827 = vmatpush1.msra.mxu0 0.0
        %828 = vmatprep.subr.mxu0 0.0
        %829 = vmatpush1.msra.mxu0 0.0
        %830 = vmatprep.subr.mxu0 0.0
        %831 = vmatpush1.msra.mxu0 0.0
        %832 = vmatprep.subr.mxu0 0.0
        %833 = vmatpush1.msra.mxu0 0.0
        %834 = vmatprep.subr.mxu0 0.0
        %835 = vmatpush1.msra.mxu0 0.0
        %836 = vmatprep.subr.mxu0 0.0
        %837 = vmatpush1.msra.mxu0 0.0
        %838 = vmatprep.subr.mxu0 0.0
        %839 = vmatpush1.msra.mxu0 0.0
        %840 = vmatprep.subr.mxu0 0.0
        %841 = vmatpush1.msra.mxu0 0.0
        %842 = vmatprep.mubr.f32.mxu0 0.0
        %843 = vmatmul.mubr.f32.gmra.mrb[0].mxu0 %v776
        %v844 = vpop.f32.mrb[0].mxu0
        %v845 = vadd.f32 0.0, %v844
        %v846 = vpop.f32.mrb[0].mxu0
        %847 = vdwg.mxu0
        %v849 = vlaneseq
        %v850 = vshrl.u32 %v849, 7
        %v851 = vsub.s32 0, %v850
        %v852 = vrot.slane %v773, %v851
        %vm854 = vcmask 64512
        %v856 = vsel %vm854, %v681, 0
        %858 = vmatprep.subr.mxu0 0.0
        %859 = vmatpush1.msra.mxu0 %v845
        %860 = vmatprep.subr.mxu0 0.0
        %861 = vmatpush1.msra.mxu0 0.0
        %862 = vmatprep.subr.mxu0 0.0
        %863 = vmatpush1.msra.mxu0 0.0
        %864 = vmatprep.subr.mxu0 0.0
        %865 = vmatpush1.msra.mxu0 0.0
        %866 = vmatprep.subr.mxu0 0.0
        %867 = vmatpush1.msra.mxu0 0.0
        %868 = vmatprep.subr.mxu0 0.0
        %869 = vmatpush1.msra.mxu0 0.0
        %870 = vmatprep.subr.mxu0 0.0
        %871 = vmatpush1.msra.mxu0 0.0
        %872 = vmatprep.subr.mxu0 0.0
        %873 = vmatpush1.msra.mxu0 0.0
        %874 = vmatprep.subr.mxu0 0.0
        %875 = vmatpush1.msra.mxu0 0.0
        %876 = vmatprep.subr.mxu0 0.0
        %877 = vmatpush1.msra.mxu0 0.0
        %878 = vmatprep.subr.mxu0 0.0
        %879 = vmatpush1.msra.mxu0 0.0
        %880 = vmatprep.subr.mxu0 0.0
        %881 = vmatpush1.msra.mxu0 0.0
        %882 = vmatprep.subr.mxu0 0.0
        %883 = vmatpush1.msra.mxu0 0.0
        %884 = vmatprep.subr.mxu0 0.0
        %885 = vmatpush1.msra.mxu0 0.0
        %886 = vmatprep.subr.mxu0 0.0
        %887 = vmatpush1.msra.mxu0 0.0
        %888 = vmatprep.subr.mxu0 0.0
        %889 = vmatpush1.msra.mxu0 0.0
        %890 = vmatprep.subr.mxu0 0.0
        %891 = vmatpush1.msra.mxu0 0.0
        %892 = vmatprep.subr.mxu0 0.0
        %893 = vmatpush1.msra.mxu0 0.0
        %894 = vmatprep.subr.mxu0 0.0
        %895 = vmatpush1.msra.mxu0 0.0
        %896 = vmatprep.subr.mxu0 0.0
        %897 = vmatpush1.msra.mxu0 0.0
        %898 = vmatprep.subr.mxu0 0.0
        %899 = vmatpush1.msra.mxu0 0.0
        %900 = vmatprep.subr.mxu0 0.0
        %901 = vmatpush1.msra.mxu0 0.0
        %902 = vmatprep.subr.mxu0 0.0
        %903 = vmatpush1.msra.mxu0 0.0
        %904 = vmatprep.subr.mxu0 0.0
        %905 = vmatpush1.msra.mxu0 0.0
        %906 = vmatprep.subr.mxu0 0.0
        %907 = vmatpush1.msra.mxu0 0.0
        %908 = vmatprep.subr.mxu0 0.0
        %909 = vmatpush1.msra.mxu0 0.0
        %910 = vmatprep.subr.mxu0 0.0
        %911 = vmatpush1.msra.mxu0 0.0
        %912 = vmatprep.subr.mxu0 0.0
        %913 = vmatpush1.msra.mxu0 0.0
        %914 = vmatprep.subr.mxu0 0.0
        %915 = vmatpush1.msra.mxu0 0.0
        %916 = vmatprep.subr.mxu0 0.0
        %917 = vmatpush1.msra.mxu0 0.0
        %918 = vmatprep.subr.mxu0 0.0
        %919 = vmatpush1.msra.mxu0 0.0
        %920 = vmatprep.subr.mxu0 0.0
        %921 = vmatpush1.msra.mxu0 0.0
        %922 = vmatprep.mubr.f32.mxu0 0.0
        %923 = vmatmul.mubr.f32.gmra.mrb[0].mxu0 %v856
        %v924 = vpop.f32.mrb[0].mxu0
        %v925 = vadd.f32 %v852, %v924
        %v926 = vpop.f32.mrb[0].mxu0
        %927 = vdwg.mxu0
        %v928 = vmax.f32 %v925, 0.0
        %v929 = vld [vmem:[%s6] sm:$0xff]
        %v930 = vld [vmem:[%s6 + $0x8] sm:$0xff]
        %v931 = vld [vmem:[%s6 + $0x10] sm:$0xff]
        %v932 = vld [vmem:[%s6 + $0x18] sm:$0xff]
        %v933 = vld [vmem:[%s7] sm:$0x1]
        %vm934 = vcmask 261120
        %v936 = vsel %vm934, %v928, 0
        %938 = vmatprep.subr.mxu0 0.0
        %939 = vmatpush1.msra.mxu0 %v929
        %940 = vmatprep.subr.mxu0 0.0
        %941 = vmatpush1.msra.mxu0 %v930
        %942 = vmatprep.subr.mxu0 0.0
        %943 = vmatpush1.msra.mxu0 %v931
        %944 = vmatprep.subr.mxu0 0.0
        %945 = vmatpush1.msra.mxu0 %v932
        %946 = vmatprep.subr.mxu0 0.0
        %947 = vmatpush1.msra.mxu0 0.0
        %948 = vmatprep.subr.mxu0 0.0
        %949 = vmatpush1.msra.mxu0 0.0
        %950 = vmatprep.subr.mxu0 0.0
        %951 = vmatpush1.msra.mxu0 0.0
        %952 = vmatprep.subr.mxu0 0.0
        %953 = vmatpush1.msra.mxu0 0.0
        %954 = vmatprep.subr.mxu0 0.0
        %955 = vmatpush1.msra.mxu0 0.0
        %956 = vmatprep.subr.mxu0 0.0
        %957 = vmatpush1.msra.mxu0 0.0
        %958 = vmatprep.subr.mxu0 0.0
        %959 = vmatpush1.msra.mxu0 0.0
        %960 = vmatprep.subr.mxu0 0.0
        %961 = vmatpush1.msra.mxu0 0.0
        %962 = vmatprep.subr.mxu0 0.0
        %963 = vmatpush1.msra.mxu0 0.0
        %964 = vmatprep.subr.mxu0 0.0
        %965 = vmatpush1.msra.mxu0 0.0
        %966 = vmatprep.subr.mxu0 0.0
        %967 = vmatpush1.msra.mxu0 0.0
        %968 = vmatprep.subr.mxu0 0.0
        %969 = vmatpush1.msra.mxu0 0.0
        %970 = vmatprep.subr.mxu0 0.0
        %971 = vmatpush1.msra.mxu0 0.0
        %972 = vmatprep.subr.mxu0 0.0
        %973 = vmatpush1.msra.mxu0 0.0
        %974 = vmatprep.subr.mxu0 0.0
        %975 = vmatpush1.msra.mxu0 0.0
        %976 = vmatprep.subr.mxu0 0.0
        %977 = vmatpush1.msra.mxu0 0.0
        %978 = vmatprep.subr.mxu0 0.0
        %979 = vmatpush1.msra.mxu0 0.0
        %980 = vmatprep.subr.mxu0 0.0
        %981 = vmatpush1.msra.mxu0 0.0
        %982 = vmatprep.subr.mxu0 0.0
        %983 = vmatpush1.msra.mxu0 0.0
        %984 = vmatprep.subr.mxu0 0.0
        %985 = vmatpush1.msra.mxu0 0.0
        %986 = vmatprep.subr.mxu0 0.0
        %987 = vmatpush1.msra.mxu0 0.0
        %988 = vmatprep.subr.mxu0 0.0
        %989 = vmatpush1.msra.mxu0 0.0
        %990 = vmatprep.subr.mxu0 0.0
        %991 = vmatpush1.msra.mxu0 0.0
        %992 = vmatprep.subr.mxu0 0.0
        %993 = vmatpush1.msra.mxu0 0.0
        %994 = vmatprep.subr.mxu0 0.0
        %995 = vmatpush1.msra.mxu0 0.0
        %996 = vmatprep.subr.mxu0 0.0
        %997 = vmatpush1.msra.mxu0 0.0
        %998 = vmatprep.subr.mxu0 0.0
        %999 = vmatpush1.msra.mxu0 0.0
        %1000 = vmatprep.subr.mxu0 0.0
        %1001 = vmatpush1.msra.mxu0 0.0
        %1002 = vmatprep.mubr.f32.mxu0 0.0
        %1003 = vmatmul.mubr.f32.gmra.mrb[0].mxu0 %v936
        %v1004 = vpop.f32.mrb[0].mxu0
        %v1005 = vadd.f32 0.0, %v1004
        %v1006 = vpop.f32.mrb[0].mxu0
        %1007 = vdwg.mxu0
        %v1009 = vlaneseq
        %v1010 = vshrl.u32 %v1009, 7
        %v1011 = vsub.s32 0, %v1010
        %v1012 = vrot.slane %v933, %v1011
        %1014 = vmatprep.subr.mxu0 0.0
        %1015 = vmatpush1.msra.mxu0 %v1005
        %1016 = vmatprep.subr.mxu0 0.0
        %1017 = vmatpush1.msra.mxu0 0.0
        %1018 = vmatprep.subr.mxu0 0.0
        %1019 = vmatpush1.msra.mxu0 0.0
        %1020 = vmatprep.subr.mxu0 0.0
        %1021 = vmatpush1.msra.mxu0 0.0
        %1022 = vmatprep.subr.mxu0 0.0
        %1023 = vmatpush1.msra.mxu0 0.0
        %1024 = vmatprep.subr.mxu0 0.0
        %1025 = vmatpush1.msra.mxu0 0.0
        %1026 = vmatprep.subr.mxu0 0.0
        %1027 = vmatpush1.msra.mxu0 0.0
        %1028 = vmatprep.subr.mxu0 0.0
        %1029 = vmatpush1.msra.mxu0 0.0
        %1030 = vmatprep.subr.mxu0 0.0
        %1031 = vmatpush1.msra.mxu0 0.0
        %1032 = vmatprep.subr.mxu0 0.0
        %1033 = vmatpush1.msra.mxu0 0.0
        %1034 = vmatprep.subr.mxu0 0.0
        %1035 = vmatpush1.msra.mxu0 0.0
        %1036 = vmatprep.subr.mxu0 0.0
        %1037 = vmatpush1.msra.mxu0 0.0
        %1038 = vmatprep.subr.mxu0 0.0
        %1039 = vmatpush1.msra.mxu0 0.0
        %1040 = vmatprep.subr.mxu0 0.0
        %1041 = vmatpush1.msra.mxu0 0.0
        %1042 = vmatprep.subr.mxu0 0.0
        %1043 = vmatpush1.msra.mxu0 0.0
        %1044 = vmatprep.subr.mxu0 0.0
        %1045 = vmatpush1.msra.mxu0 0.0
        %1046 = vmatprep.subr.mxu0 0.0
        %1047 = vmatpush1.msra.mxu0 0.0
        %1048 = vmatprep.subr.mxu0 0.0
        %1049 = vmatpush1.msra.mxu0 0.0
        %1050 = vmatprep.subr.mxu0 0.0
        %1051 = vmatpush1.msra.mxu0 0.0
        %1052 = vmatprep.subr.mxu0 0.0
        %1053 = vmatpush1.msra.mxu0 0.0
        %1054 = vmatprep.subr.mxu0 0.0
        %1055 = vmatpush1.msra.mxu0 0.0
        %1056 = vmatprep.subr.mxu0 0.0
        %1057 = vmatpush1.msra.mxu0 0.0
        %1058 = vmatprep.subr.mxu0 0.0
        %1059 = vmatpush1.msra.mxu0 0.0
        %1060 = vmatprep.subr.mxu0 0.0
        %1061 = vmatpush1.msra.mxu0 0.0
        %1062 = vmatprep.subr.mxu0 0.0
        %1063 = vmatpush1.msra.mxu0 0.0
        %1064 = vmatprep.subr.mxu0 0.0
        %1065 = vmatpush1.msra.mxu0 0.0
        %1066 = vmatprep.subr.mxu0 0.0
        %1067 = vmatpush1.msra.mxu0 0.0
        %1068 = vmatprep.subr.mxu0 0.0
        %1069 = vmatpush1.msra.mxu0 0.0
        %1070 = vmatprep.subr.mxu0 0.0
        %1071 = vmatpush1.msra.mxu0 0.0
        %1072 = vmatprep.subr.mxu0 0.0
        %1073 = vmatpush1.msra.mxu0 0.0
        %1074 = vmatprep.subr.mxu0 0.0
        %1075 = vmatpush1.msra.mxu0 0.0
        %1076 = vmatprep.subr.mxu0 0.0
        %1077 = vmatpush1.msra.mxu0 0.0
        %1078 = vmatprep.mubr.f32.mxu0 0.0
        %1079 = vmatmul.mubr.f32.gmra.mrb[0].mxu0 %v856
        %v1080 = vpop.f32.mrb[0].mxu0
        %v1081 = vadd.f32 %v1012, %v1080
        %v1082 = vpop.f32.mrb[0].mxu0
        %1083 = vdwg.mxu0
        %v1084 = vmax.f32 %v1081, 0.0
        %1085 = vst.msk [vmem:[%s636] sm:$0xff] %vm774, %v768
        %vm1086 = vcmask 195584
        %1087 = vst.msk [vmem:[%s643] sm:$0xff] %vm1086, %v1084
        %v1088 = vld [vmem:[%s8] sm:$0xff]
        %v1089 = vld [vmem:[%s8 + $0x8] sm:$0xff]
        %v1090 = vld [vmem:[%s8 + $0x10] sm:$0xff]
        %v1091 = vld [vmem:[%s9] sm:$0x1]
        %v1092 = vld [vmem:[%s10] sm:$0xff]
        %v1093 = vld [vmem:[%s10 + $0x8] sm:$0xff]
        %v1094 = vld [vmem:[%s10 + $0x10] sm:$0xff]
        %v1095 = vld [vmem:[%s11] sm:$0x1]
        %v1097 = vlaneseq
        %v1098 = vshrl.u32 %v1097, 7
        %v1099 = vsub.s32 0, %v1098
        %v1100 = vrot.slane %v1091, %v1099
        %v1103 = vsel %vm1086, %v1084, 0
        %1105 = vmatprep.subr.mxu0 0.0
        %1106 = vmatpush1.msra.mxu0 %v1088
        %1107 = vmatprep.subr.mxu0 0.0
        %1108 = vmatpush1.msra.mxu0 %v1089
        %1109 = vmatprep.subr.mxu0 0.0
        %1110 = vmatpush1.msra.mxu0 %v1090
        %1111 = vmatprep.subr.mxu0 0.0
        %1112 = vmatpush1.msra.mxu0 0.0
        %1113 = vmatprep.subr.mxu0 0.0
        %1114 = vmatpush1.msra.mxu0 0.0
        %1115 = vmatprep.subr.mxu0 0.0
        %1116 = vmatpush1.msra.mxu0 0.0
        %1117 = vmatprep.subr.mxu0 0.0
        %1118 = vmatpush1.msra.mxu0 0.0
        %1119 = vmatprep.subr.mxu0 0.0
        %1120 = vmatpush1.msra.mxu0 0.0
        %1121 = vmatprep.subr.mxu0 0.0
        %1122 = vmatpush1.msra.mxu0 0.0
        %1123 = vmatprep.subr.mxu0 0.0
        %1124 = vmatpush1.msra.mxu0 0.0
        %1125 = vmatprep.subr.mxu0 0.0
        %1126 = vmatpush1.msra.mxu0 0.0
        %1127 = vmatprep.subr.mxu0 0.0
        %1128 = vmatpush1.msra.mxu0 0.0
        %1129 = vmatprep.subr.mxu0 0.0
        %1130 = vmatpush1.msra.mxu0 0.0
        %1131 = vmatprep.subr.mxu0 0.0
        %1132 = vmatpush1.msra.mxu0 0.0
        %1133 = vmatprep.subr.mxu0 0.0
        %1134 = vmatpush1.msra.mxu0 0.0
        %1135 = vmatprep.subr.mxu0 0.0
        %1136 = vmatpush1.msra.mxu0 0.0
        %1137 = vmatprep.subr.mxu0 0.0
        %1138 = vmatpush1.msra.mxu0 0.0
        %1139 = vmatprep.subr.mxu0 0.0
        %1140 = vmatpush1.msra.mxu0 0.0
        %1141 = vmatprep.subr.mxu0 0.0
        %1142 = vmatpush1.msra.mxu0 0.0
        %1143 = vmatprep.subr.mxu0 0.0
        %1144 = vmatpush1.msra.mxu0 0.0
        %1145 = vmatprep.subr.mxu0 0.0
        %1146 = vmatpush1.msra.mxu0 0.0
        %1147 = vmatprep.subr.mxu0 0.0
        %1148 = vmatpush1.msra.mxu0 0.0
        %1149 = vmatprep.subr.mxu0 0.0
        %1150 = vmatpush1.msra.mxu0 0.0
        %1151 = vmatprep.subr.mxu0 0.0
        %1152 = vmatpush1.msra.mxu0 0.0
        %1153 = vmatprep.subr.mxu0 0.0
        %1154 = vmatpush1.msra.mxu0 0.0
        %1155 = vmatprep.subr.mxu0 0.0
        %1156 = vmatpush1.msra.mxu0 0.0
        %1157 = vmatprep.subr.mxu0 0.0
        %1158 = vmatpush1.msra.mxu0 0.0
        %1159 = vmatprep.subr.mxu0 0.0
        %1160 = vmatpush1.msra.mxu0 0.0
        %1161 = vmatprep.subr.mxu0 0.0
        %1162 = vmatpush1.msra.mxu0 0.0
        %1163 = vmatprep.subr.mxu0 0.0
        %1164 = vmatpush1.msra.mxu0 0.0
        %1165 = vmatprep.subr.mxu0 0.0
        %1166 = vmatpush1.msra.mxu0 0.0
        %1167 = vmatprep.subr.mxu0 0.0
        %1168 = vmatpush1.msra.mxu0 0.0
        %1169 = vmatprep.mubr.f32.mxu0 0.0
        %1170 = vmatmul.mubr.f32.gmra.mrb[0].mxu0 %v1103
        %v1171 = vpop.f32.mrb[0].mxu0
        %v1172 = vadd.f32 %v1100, %v1171
        %v1173 = vpop.f32.mrb[0].mxu0
        %1174 = vdwg.mxu0
        %vm1175 = vcmp.gt.f32.partialorder %v1172, 0.0
        %v1176 = vmul.f32 %v1172, 0.2
        %v1177 = vsel %vm1175, %v1172, %v1176
        %v1179 = vlaneseq
        %v1180 = vshrl.u32 %v1179, 7
        %v1181 = vsub.s32 0, %v1180
        %v1182 = vrot.slane %v1095, %v1181
        %v1185 = vsel %vm1086, %v1177, 0
        %1187 = vmatprep.subr.mxu0 0.0
        %1188 = vmatpush1.msra.mxu0 %v1092
        %1189 = vmatprep.subr.mxu0 0.0
        %1190 = vmatpush1.msra.mxu0 %v1093
        %1191 = vmatprep.subr.mxu0 0.0
        %1192 = vmatpush1.msra.mxu0 %v1094
        %1193 = vmatprep.subr.mxu0 0.0
        %1194 = vmatpush1.msra.mxu0 0.0
        %1195 = vmatprep.subr.mxu0 0.0
        %1196 = vmatpush1.msra.mxu0 0.0
        %1197 = vmatprep.subr.mxu0 0.0
        %1198 = vmatpush1.msra.mxu0 0.0
        %1199 = vmatprep.subr.mxu0 0.0
        %1200 = vmatpush1.msra.mxu0 0.0
        %1201 = vmatprep.subr.mxu0 0.0
        %1202 = vmatpush1.msra.mxu0 0.0
        %1203 = vmatprep.subr.mxu0 0.0
        %1204 = vmatpush1.msra.mxu0 0.0
        %1205 = vmatprep.subr.mxu0 0.0
        %1206 = vmatpush1.msra.mxu0 0.0
        %1207 = vmatprep.subr.mxu0 0.0
        %1208 = vmatpush1.msra.mxu0 0.0
        %1209 = vmatprep.subr.mxu0 0.0
        %1210 = vmatpush1.msra.mxu0 0.0
        %1211 = vmatprep.subr.mxu0 0.0
        %1212 = vmatpush1.msra.mxu0 0.0
        %1213 = vmatprep.subr.mxu0 0.0
        %1214 = vmatpush1.msra.mxu0 0.0
        %1215 = vmatprep.subr.mxu0 0.0
        %1216 = vmatpush1.msra.mxu0 0.0
        %1217 = vmatprep.subr.mxu0 0.0
        %1218 = vmatpush1.msra.mxu0 0.0
        %1219 = vmatprep.subr.mxu0 0.0
        %1220 = vmatpush1.msra.mxu0 0.0
        %1221 = vmatprep.subr.mxu0 0.0
        %1222 = vmatpush1.msra.mxu0 0.0
        %1223 = vmatprep.subr.mxu0 0.0
        %1224 = vmatpush1.msra.mxu0 0.0
        %1225 = vmatprep.subr.mxu0 0.0
        %1226 = vmatpush1.msra.mxu0 0.0
        %1227 = vmatprep.subr.mxu0 0.0
        %1228 = vmatpush1.msra.mxu0 0.0
        %1229 = vmatprep.subr.mxu0 0.0
        %1230 = vmatpush1.msra.mxu0 0.0
        %1231 = vmatprep.subr.mxu0 0.0
        %1232 = vmatpush1.msra.mxu0 0.0
        %1233 = vmatprep.subr.mxu0 0.0
        %1234 = vmatpush1.msra.mxu0 0.0
        %1235 = vmatprep.subr.mxu0 0.0
        %1236 = vmatpush1.msra.mxu0 0.0
        %1237 = vmatprep.subr.mxu0 0.0
        %1238 = vmatpush1.msra.mxu0 0.0
        %1239 = vmatprep.subr.mxu0 0.0
        %1240 = vmatpush1.msra.mxu0 0.0
        %1241 = vmatprep.subr.mxu0 0.0
        %1242 = vmatpush1.msra.mxu0 0.0
        %1243 = vmatprep.subr.mxu0 0.0
        %1244 = vmatpush1.msra.mxu0 0.0
        %1245 = vmatprep.subr.mxu0 0.0
        %1246 = vmatpush1.msra.mxu0 0.0
        %1247 = vmatprep.subr.mxu0 0.0
        %1248 = vmatpush1.msra.mxu0 0.0
        %1249 = vmatprep.subr.mxu0 0.0
        %1250 = vmatpush1.msra.mxu0 0.0
        %1251 = vmatprep.mubr.f32.mxu0 0.0
        %1252 = vmatmul.mubr.f32.gmra.mrb[0].mxu0 %v1185
        %v1253 = vpop.f32.mrb[0].mxu0
        %v1254 = vadd.f32 %v1182, %v1253
        %v1255 = vpop.f32.mrb[0].mxu0
        %1256 = vdwg.mxu0
        %vm1257 = vcmask 15360
        %v1258 = vsel %vm1257, %v1254, -inf
        %1259 = vmax.xlane.f32.xlu0 %v1258
        %v1260 = vpop.xlane.xlu0 %1259
        %v1261 = vsub.f32 %v1254, %v1260
        %v1262 = vmul.f32 %v1261, 1.442695
        %v1263 = vpow.pop %v1262
        %v1264 = vsel %vm1257, %v1263, 0.0
        %1265 = vadd.xlane.f32.xlu0 %v1264
        %v1266 = vpop.xlane.xlu0 %1265
        %v1267 = vlog2.pop %v1266
        %v1268 = vmul.f32 %v1267, 0.6931472
        %v1269 = vadd.f32 %v1268, %v1260
        %v1270 = vsub.f32 %v1254, %v1269
        %1271 = vst.msk [vmem:[%s675] sm:$0xff] %vm1257, %v1270
        %v1272 = vld [vmem:[%s12] sm:$0xff]
        %v1273 = vld [vmem:[%s12 + $0x8] sm:$0xff]
        %v1274 = vld [vmem:[%s13] sm:$0x1]
        %v1275 = vld [vmem:[%s14] sm:$0xff]
        %v1276 = vld [vmem:[%s14 + $0x8] sm:$0xff]
        %v1277 = vld [vmem:[%s15] sm:$0x1]
        %v1279 = vlaneseq
        %v1280 = vshrl.u32 %v1279, 7
        %v1281 = vsub.s32 0, %v1280
        %v1282 = vrot.slane %v1274, %v1281
        %1284 = vmatprep.subr.mxu0 0.0
        %1285 = vmatpush1.msra.mxu0 %v1272
        %1286 = vmatprep.subr.mxu0 0.0
        %1287 = vmatpush1.msra.mxu0 %v1273
        %1288 = vmatprep.subr.mxu0 0.0
        %1289 = vmatpush1.msra.mxu0 0.0
        %1290 = vmatprep.subr.mxu0 0.0
        %1291 = vmatpush1.msra.mxu0 0.0
        %1292 = vmatprep.subr.mxu0 0.0
        %1293 = vmatpush1.msra.mxu0 0.0
        %1294 = vmatprep.subr.mxu0 0.0
        %1295 = vmatpush1.msra.mxu0 0.0
        %1296 = vmatprep.subr.mxu0 0.0
        %1297 = vmatpush1.msra.mxu0 0.0
        %1298 = vmatprep.subr.mxu0 0.0
        %1299 = vmatpush1.msra.mxu0 0.0
        %1300 = vmatprep.subr.mxu0 0.0
        %1301 = vmatpush1.msra.mxu0 0.0
        %1302 = vmatprep.subr.mxu0 0.0
        %1303 = vmatpush1.msra.mxu0 0.0
        %1304 = vmatprep.subr.mxu0 0.0
        %1305 = vmatpush1.msra.mxu0 0.0
        %1306 = vmatprep.subr.mxu0 0.0
        %1307 = vmatpush1.msra.mxu0 0.0
        %1308 = vmatprep.subr.mxu0 0.0
        %1309 = vmatpush1.msra.mxu0 0.0
        %1310 = vmatprep.subr.mxu0 0.0
        %1311 = vmatpush1.msra.mxu0 0.0
        %1312 = vmatprep.subr.mxu0 0.0
        %1313 = vmatpush1.msra.mxu0 0.0
        %1314 = vmatprep.subr.mxu0 0.0
        %1315 = vmatpush1.msra.mxu0 0.0
        %1316 = vmatprep.subr.mxu0 0.0
        %1317 = vmatpush1.msra.mxu0 0.0
        %1318 = vmatprep.subr.mxu0 0.0
        %1319 = vmatpush1.msra.mxu0 0.0
        %1320 = vmatprep.subr.mxu0 0.0
        %1321 = vmatpush1.msra.mxu0 0.0
        %1322 = vmatprep.subr.mxu0 0.0
        %1323 = vmatpush1.msra.mxu0 0.0
        %1324 = vmatprep.subr.mxu0 0.0
        %1325 = vmatpush1.msra.mxu0 0.0
        %1326 = vmatprep.subr.mxu0 0.0
        %1327 = vmatpush1.msra.mxu0 0.0
        %1328 = vmatprep.subr.mxu0 0.0
        %1329 = vmatpush1.msra.mxu0 0.0
        %1330 = vmatprep.subr.mxu0 0.0
        %1331 = vmatpush1.msra.mxu0 0.0
        %1332 = vmatprep.subr.mxu0 0.0
        %1333 = vmatpush1.msra.mxu0 0.0
        %1334 = vmatprep.subr.mxu0 0.0
        %1335 = vmatpush1.msra.mxu0 0.0
        %1336 = vmatprep.subr.mxu0 0.0
        %1337 = vmatpush1.msra.mxu0 0.0
        %1338 = vmatprep.subr.mxu0 0.0
        %1339 = vmatpush1.msra.mxu0 0.0
        %1340 = vmatprep.subr.mxu0 0.0
        %1341 = vmatpush1.msra.mxu0 0.0
        %1342 = vmatprep.subr.mxu0 0.0
        %1343 = vmatpush1.msra.mxu0 0.0
        %1344 = vmatprep.subr.mxu0 0.0
        %1345 = vmatpush1.msra.mxu0 0.0
        %1346 = vmatprep.subr.mxu0 0.0
        %1347 = vmatpush1.msra.mxu0 0.0
        %1348 = vmatprep.mubr.f32.mxu0 0.0
        %1349 = vmatmul.mubr.f32.gmra.mrb[0].mxu0 %v776
        %v1350 = vpop.f32.mrb[0].mxu0
        %v1351 = vadd.f32 %v1282, %v1350
        %v1352 = vpop.f32.mrb[0].mxu0
        %1353 = vdwg.mxu0
        %vm1354 = vcmp.gt.f32.partialorder %v1351, 0.0
        %v1355 = vmul.f32 %v1351, 0.2
        %v1356 = vsel %vm1354, %v1351, %v1355
        %v1358 = vlaneseq
        %v1359 = vshrl.u32 %v1358, 7
        %v1360 = vsub.s32 0, %v1359
        %v1361 = vrot.slane %v1277, %v1360
        %v1364 = vsel %vm774, %v1356, 0
        %1366 = vmatprep.subr.mxu0 0.0
        %1367 = vmatpush1.msra.mxu0 %v1275
        %1368 = vmatprep.subr.mxu0 0.0
        %1369 = vmatpush1.msra.mxu0 %v1276
        %1370 = vmatprep.subr.mxu0 0.0
        %1371 = vmatpush1.msra.mxu0 0.0
        %1372 = vmatprep.subr.mxu0 0.0
        %1373 = vmatpush1.msra.mxu0 0.0
        %1374 = vmatprep.subr.mxu0 0.0
        %1375 = vmatpush1.msra.mxu0 0.0
        %1376 = vmatprep.subr.mxu0 0.0
        %1377 = vmatpush1.msra.mxu0 0.0
        %1378 = vmatprep.subr.mxu0 0.0
        %1379 = vmatpush1.msra.mxu0 0.0
        %1380 = vmatprep.subr.mxu0 0.0
        %1381 = vmatpush1.msra.mxu0 0.0
        %1382 = vmatprep.subr.mxu0 0.0
        %1383 = vmatpush1.msra.mxu0 0.0
        %1384 = vmatprep.subr.mxu0 0.0
        %1385 = vmatpush1.msra.mxu0 0.0
        %1386 = vmatprep.subr.mxu0 0.0
        %1387 = vmatpush1.msra.mxu0 0.0
        %1388 = vmatprep.subr.mxu0 0.0
        %1389 = vmatpush1.msra.mxu0 0.0
        %1390 = vmatprep.subr.mxu0 0.0
        %1391 = vmatpush1.msra.mxu0 0.0
        %1392 = vmatprep.subr.mxu0 0.0
        %1393 = vmatpush1.msra.mxu0 0.0
        %1394 = vmatprep.subr.mxu0 0.0
        %1395 = vmatpush1.msra.mxu0 0.0
        %1396 = vmatprep.subr.mxu0 0.0
        %1397 = vmatpush1.msra.mxu0 0.0
        %1398 = vmatprep.subr.mxu0 0.0
        %1399 = vmatpush1.msra.mxu0 0.0
        %1400 = vmatprep.subr.mxu0 0.0
        %1401 = vmatpush1.msra.mxu0 0.0
        %1402 = vmatprep.subr.mxu0 0.0
        %1403 = vmatpush1.msra.mxu0 0.0
        %1404 = vmatprep.subr.mxu0 0.0
        %1405 = vmatpush1.msra.mxu0 0.0
        %1406 = vmatprep.subr.mxu0 0.0
        %1407 = vmatpush1.msra.mxu0 0.0
        %1408 = vmatprep.subr.mxu0 0.0
        %1409 = vmatpush1.msra.mxu0 0.0
        %1410 = vmatprep.subr.mxu0 0.0
        %1411 = vmatpush1.msra.mxu0 0.0
        %1412 = vmatprep.subr.mxu0 0.0
        %1413 = vmatpush1.msra.mxu0 0.0
        %1414 = vmatprep.subr.mxu0 0.0
        %1415 = vmatpush1.msra.mxu0 0.0
        %1416 = vmatprep.subr.mxu0 0.0
        %1417 = vmatpush1.msra.mxu0 0.0
        %1418 = vmatprep.subr.mxu0 0.0
        %1419 = vmatpush1.msra.mxu0 0.0
        %1420 = vmatprep.subr.mxu0 0.0
        %1421 = vmatpush1.msra.mxu0 0.0
        %1422 = vmatprep.subr.mxu0 0.0
        %1423 = vmatpush1.msra.mxu0 0.0
        %1424 = vmatprep.subr.mxu0 0.0
        %1425 = vmatpush1.msra.mxu0 0.0
        %1426 = vmatprep.subr.mxu0 0.0
        %1427 = vmatpush1.msra.mxu0 0.0
        %1428 = vmatprep.subr.mxu0 0.0
        %1429 = vmatpush1.msra.mxu0 0.0
        %1430 = vmatprep.mubr.f32.mxu0 0.0
        %1431 = vmatmul.mubr.f32.gmra.mrb[0].mxu0 %v1364
        %v1432 = vpop.f32.mrb[0].mxu0
        %v1433 = vadd.f32 %v1361, %v1432
        %v1434 = vpop.f32.mrb[0].mxu0
        %1435 = vdwg.mxu0
        %v1436 = vsel %vm1257, %v1433, -inf
        %1437 = vmax.xlane.f32.xlu0 %v1436
        %v1438 = vpop.xlane.xlu0 %1437
        %v1439 = vsub.f32 %v1433, %v1438
        %v1440 = vmul.f32 %v1439, 1.442695
        %v1441 = vpow.pop %v1440
        %v1442 = vsel %vm1257, %v1441, 0.0
        %1443 = vadd.xlane.f32.xlu0 %v1442
        %v1444 = vpop.xlane.xlu0 %1443
        %v1445 = vlog2.pop %v1444
        %v1446 = vmul.f32 %v1445, 0.6931472
        %v1447 = vadd.f32 %v1446, %v1438
        %v1448 = vsub.f32 %v1433, %v1447
        %1449 = vst.msk [vmem:[%s679] sm:$0xff] %vm1257, %v1448
        %s1450 = sand.u32 %s401, 1
        %s1451 = scalar_lea.sflag [#allocation3], %s1450
        %s1452 = sand.u32 %s401, 1
        %s1453 = smul.addr %s1452, 8
        %s1454 = scalar_lea.vmem [#allocation2], %s1453
        %s1455 = sand.u32 %s427, 1
        %s1456 = scalar_lea.sflag [#allocation5], %s1455
        %s1457 = sand.u32 %s427, 1
        %s1458 = smul.addr %s1457, 8
        %s1459 = scalar_lea.vmem [#allocation4], %s1458
        %p1460 = scmp.lt.s32.totalorder %s37, 2
        %s1461 = scalar_select %p1460, %s37, 2
        %s1462 = smul.addr %s1461, 8
        %s1463 = scalar_lea.vmem %s18, %s1462
        %p1464 = scmp.lt.s32.totalorder %s37, 2
        %s1465 = scalar_select %p1464, %s37, 2
        %s1466 = smul.addr %s1465, 8
        %s1467 = scalar_lea.vmem %s19, %s1466
        // Predicated region
        $region85: #{tpu_custom_call.1} parent=83 // pred_check
          %p1468 = pneg %p411
        $region86: #{tpu_custom_call.1} parent=83 // pred_check_branch
          %1470 = sbr.rel (%p1468) target = $region88
        $region87: #{tpu_custom_call.1} parent=83 // pred_region
          %s1472 = ssub.s32 128, 128
          %1473 = vsyncadd %s1451, %s1472
          %s1474 = smul.addr %s37, 128
          %s1475 = scalar_lea.hbm %s16, %s1474
          %s1477 = sshll.u32 %s1454, 4
          %s1478 = int_to_ptr.vmem [resolvable:$true] %s1477
          %1480 = dma.vmem_to_hbm [thread:$0]  %s1478, 128, %s1475, %s1451
        $region88: #{tpu_custom_call.1} parent=83 // pred_fallthru
          _
        // Predicated region
        $region89: #{tpu_custom_call.1} parent=83 // pred_check
          %p1481 = pneg %p437
        $region90: #{tpu_custom_call.1} parent=83 // pred_check_branch
          %1483 = sbr.rel (%p1481) target = $region92
        $region91: #{tpu_custom_call.1} parent=83 // pred_region
          %s1485 = ssub.s32 128, 128
          %1486 = vsyncadd %s1456, %s1485
          %s1487 = smul.addr %s37, 128
          %s1488 = scalar_lea.hbm %s17, %s1487
          %s1490 = sshll.u32 %s1459, 4
          %s1491 = int_to_ptr.vmem [resolvable:$true] %s1490
          %1493 = dma.vmem_to_hbm [thread:$0]  %s1491, 128, %s1488, %s1456
        $region92: #{tpu_custom_call.1} parent=83 // pred_fallthru
          _
        // Predicated region
        $region93: #{tpu_custom_call.1} parent=83 // pred_check
          %p1494 = pneg %p463
        $region94: #{tpu_custom_call.1} parent=83 // pred_check_branch
          %1496 = sbr.rel (%p1494) target = $region96
        $region95: #{tpu_custom_call.1} parent=83 // pred_region
          _
        $region96: #{tpu_custom_call.1} parent=83 // pred_fallthru
          _
        // Predicated region
        $region97: #{tpu_custom_call.1} parent=83 // pred_check
          %p1497 = pneg %p489
        $region98: #{tpu_custom_call.1} parent=83 // pred_check_branch
          %1499 = sbr.rel (%p1497) target = $region100
        $region99: #{tpu_custom_call.1} parent=83 // pred_region
          _
        $region100: #{tpu_custom_call.1} parent=83 // pred_fallthru
          _
      $region84: #{tpu_custom_call.1} parent=5 // pred_fallthru
        _
      %p1500 = scmp.le.s32.totalorder 2, %s32
      // Predicated region
      $region101: #{tpu_custom_call.1} parent=5 // pred_check
        %p1501 = pneg %p1500
      $region102: #{tpu_custom_call.1} parent=5 // pred_check_branch
        %1503 = sbr.rel (%p1501) target = $region104
      $region103: #{tpu_custom_call.1} parent=5 // pred_region
        %s1504 = ssub.s32 %s32, 2
        // Predicated region
        $region105: #{tpu_custom_call.1} parent=103 // pred_check
          %p1505 = pneg %p417
        $region106: #{tpu_custom_call.1} parent=103 // pred_check_branch
          %1507 = sbr.rel (%p1505) target = $region108
        $region107: #{tpu_custom_call.1} parent=103 // pred_region
          %s1508 = sand.u32 %s402, 1
          %s1509 = scalar_lea.sflag [#allocation3], %s1508
          %s1510 = sand.u32 %s402, 1
          %s1511 = smul.addr %s1510, 8
          %s1512 = scalar_lea.vmem [#allocation2], %s1511
          %1513 = dma.done %s1509, 128
        $region108: #{tpu_custom_call.1} parent=103 // pred_fallthru
          _
        // Predicated region
        $region109: #{tpu_custom_call.1} parent=103 // pred_check
          %p1514 = pneg %p443
        $region110: #{tpu_custom_call.1} parent=103 // pred_check_branch
          %1516 = sbr.rel (%p1514) target = $region112
        $region111: #{tpu_custom_call.1} parent=103 // pred_region
          %s1517 = sand.u32 %s428, 1
          %s1518 = scalar_lea.sflag [#allocation5], %s1517
          %s1519 = sand.u32 %s428, 1
          %s1520 = smul.addr %s1519, 8
          %s1521 = scalar_lea.vmem [#allocation4], %s1520
          %1522 = dma.done %s1518, 128
        $region112: #{tpu_custom_call.1} parent=103 // pred_fallthru
          _
        // Predicated region
        $region113: #{tpu_custom_call.1} parent=103 // pred_check
          %p1523 = pneg %p469
        $region114: #{tpu_custom_call.1} parent=103 // pred_check_branch
          %1525 = sbr.rel (%p1523) target = $region116
        $region115: #{tpu_custom_call.1} parent=103 // pred_region
          %p1526 = scmp.lt.s32.totalorder %s38, 2
          %s1527 = scalar_select %p1526, %s38, 2
          %s1528 = smul.addr %s1527, 8
          %s1529 = scalar_lea.vmem %s18, %s1528
        $region116: #{tpu_custom_call.1} parent=103 // pred_fallthru
          _
        // Predicated region
        $region117: #{tpu_custom_call.1} parent=103 // pred_check
          %p1530 = pneg %p495
        $region118: #{tpu_custom_call.1} parent=103 // pred_check_branch
          %1532 = sbr.rel (%p1530) target = $region120
        $region119: #{tpu_custom_call.1} parent=103 // pred_region
          %p1533 = scmp.lt.s32.totalorder %s38, 2
          %s1534 = scalar_select %p1533, %s38, 2
          %s1535 = smul.addr %s1534, 8
          %s1536 = scalar_lea.vmem %s19, %s1535
        $region120: #{tpu_custom_call.1} parent=103 // pred_fallthru
          _
      $region104: #{tpu_custom_call.1} parent=5 // pred_fallthru
        _
    $region6: #{tpu_custom_call.1} parent=1 // loop_footer
      %s36 = sadd.s32 1, %s32
    $region7: #{tpu_custom_call.1} parent=1 // loop_footer_branch
      %31 = sbr.rel target = $region3
    $region8: #{tpu_custom_call.1} parent=1 // loop_exit
      _
    %1537 = vsyncpa [#allocation3], 1
    %s1538 = scalar_lea.sflag [#allocation3], 1
    %1539 = vsyncpa %s1538, 1
    %1540 = vsyncpa [#allocation5], 1
    %s1541 = scalar_lea.sflag [#allocation5], 1
    %1542 = vsyncpa %s1541, 1

</llo_original>
